<compile_context>
chip_gen: v7x
topology: tpu7x:2x2x1
jax: 0.10.0
libtpu: 0.0.40
codegen_flags: <defaults>
</compile_context>

<pallas_src>
import numpy as np
import jax
import jax.numpy as jnp
from jax.experimental import pallas as pl

EPS = 1e-5
WDT = jnp.bfloat16        # dtype of the big matmul operands (weights + casts)

# --- small, module-consistent hyperparameters --------------------------------
B = 2                 # batch
N = 16                # number of positions in x (x.shape[1])
INPUT_SIZE = 32       # input_size == input_size_subset
SIM_SIZE = 16         # sim_size
LS = 64               # indexes_full_state == subset length
FX = INPUT_SIZE + SIM_SIZE

# hidden dims hard-coded in the PyTorch module
H1_S, H2_S = 256, 128
H1, H2, H3 = 512, 256, 128
HCAT = H3 + 128       # 256

BN_ = B * N           # total query positions   (32)
BL_ = B * LS          # total subset positions  (128)
ROWW = H1             # lane width of the packed small-parameter rows (512)


# --- Pallas kernel ------------------------------------------------------------
def _qnet_kernel(xm_ref, xs_ref, sub_ref,
                 rows_ref, w1s_ref, w2s_ref, subcol_ref, m_ref, wbias_ref,
                 w1_ref, w2_ref, w3e_ref,
                 out_ref):
    """Fused forward pass for all B batch elements (single invocation).

    rows_ref (12, ROWW) packs all small per-channel vectors (lane offset 0):
      0/1 bn1_s scale/shift(32)   2 conv1_s bias(256, bn2_s folded)
      3   conv2_s bias(128, bn3_s folded)
      4/5 bn_bias scale/shift(16) 6/7 bn1 scale/shift(32)
      8   conv1 bias(512, bn2 folded)  9 conv2 bias(256, bn3 folded)
      10  conv_bias bias (scalar)     11 folded output constant (scalar)
    subcol_ref (max(H2_S, B*LS), 3):
      col0 conv3_s weight (H2_S rows); col1/2 bn_last_s scale / shift tiled
      over batch (B*LS rows, conv3_s bias folded into the shift).
    """
    def mm(a, b):
        return jnp.dot(a, b, preferred_element_type=jnp.float32)

    relu = lambda v: jnp.maximum(v, 0.0)
    R = rows_ref

    # ---- subset branch: (B*LS, 32) -> per-batch scalar spread over rows ------
    s = relu(sub_ref[...] * R[0:1, 0:INPUT_SIZE] + R[1:2, 0:INPUT_SIZE])   # (BL,32)
    s = relu(mm(s.astype(WDT), w1s_ref[...]) + R[2:3, 0:H1_S])             # (BL,256)
    s = relu(mm(s.astype(WDT), w2s_ref[...]) + R[3:4, 0:H2_S])             # (BL,128)
    s3 = mm(s, subcol_ref[0:H2_S, 0:1])                                    # (BL,1)
    t = relu(s3 * subcol_ref[0:BL_, 1:2] + subcol_ref[0:BL_, 2:3])         # (BL,1)
    sub_part = mm(m_ref[...], t)                                           # (BN,1)

    # ---- bias branch: sigmoid gate from the trailing SIM_SIZE features -------
    xb = relu(xs_ref[...] * R[4:5, 0:SIM_SIZE] + R[5:6, 0:SIM_SIZE])       # (BN,16)
    gate = mm(xb, wbias_ref[...]) + R[10:11, 0:1]                          # (BN,1)

    # ---- main branch ----------------------------------------------------------
    h = relu(xm_ref[...] * R[6:7, 0:INPUT_SIZE] + R[7:8, 0:INPUT_SIZE])    # (BN,32)
    h = relu(mm(h.astype(WDT), w1_ref[...]) + R[8:9, 0:H1])                # (BN,512)
    h = relu(mm(h.astype(WDT), w2_ref[...]) + R[9:10, 0:H2])               # (BN,256)
    main_part = mm(h, w3e_ref[...])                                        # (BN,1)

    out = main_part + sub_part + R[11:12, 0:1]
    out_ref[...] = jax.nn.sigmoid(gate) * out


@jax.jit
def qnet_forward(x, subset, kp):
    # split / flatten in XLA (free) so the kernel only sees clean 2-D operands
    xm = x[:, :, :INPUT_SIZE].reshape(BN_, INPUT_SIZE)
    xs = x[:, :, INPUT_SIZE:].reshape(BN_, SIM_SIZE)
    sub = subset.reshape(BL_, INPUT_SIZE)
    out = pl.pallas_call(
        _qnet_kernel,
        out_shape=jax.ShapeDtypeStruct((BN_, 1), jnp.float32),
    )(xm, xs, sub,
      kp['rows'], kp['w1s'], kp['w2s'], kp['subcol'], kp['m'], kp['wbias'],
      kp['w1'], kp['w2'], kp['w3e'])
    return out.reshape(B, N)


# --- deterministic parameter construction -------------------------------------
def init_params(key):
    ks = iter(jax.random.split(key, 64))

    def conv(cin, cout):
        w = jax.random.normal(next(ks), (cout, cin, 1), jnp.float32) / np.sqrt(cin)
        b = 0.05 * jax.random.normal(next(ks), (cout,), jnp.float32)
        return w, b

    def linear(cin, cout):
        w = jax.random.normal(next(ks), (cout, cin), jnp.float32) / np.sqrt(cin)
        b = 0.05 * jax.random.normal(next(ks), (cout,), jnp.float32)
        return w, b

    def bn(c):
        gamma = 1.0 + 0.1 * jax.random.normal(next(ks), (c,), jnp.float32)
        beta = 0.1 * jax.random.normal(next(ks), (c,), jnp.float32)
        mean = 0.1 * jax.random.normal(next(ks), (c,), jnp.float32)
        var = 1.0 + 0.2 * jax.random.uniform(next(ks), (c,), jnp.float32)
        return gamma, beta, mean, var

    p = {}
    p['conv1_s'] = conv(INPUT_SIZE, H1_S); p['bn1_s'] = bn(INPUT_SIZE)
    p['conv2_s'] = conv(H1_S, H2_S);       p['bn2_s'] = bn(H1_S)
    p['conv3_s'] = conv(H2_S, 1);          p['bn3_s'] = bn(H2_S)
    p['linear_s'] = linear(LS, 128);       p['bn_last_s'] = bn(LS)
    p['conv1'] = conv(INPUT_SIZE, H1);     p['bn1'] = bn(INPUT_SIZE)
    p['conv2'] = conv(H1, H2);             p['bn2'] = bn(H1)
    p['conv3'] = conv(H2, H3);             p['bn3'] = bn(H2)
    p['conv_final2'] = conv(HCAT, 1);      p['bn_final'] = bn(HCAT)
    p['conv_bias'] = conv(SIM_SIZE, 1);    p['bn_bias'] = bn(SIM_SIZE)
    # final_q exists in __init__ but is unused in forward.
    return p


def kernel_params(p):
    """Host-side folding/packing of the PyTorch parameters for the kernel."""
    def fold_bn(name):
        gamma, beta, mean, var = p[name]
        scale = gamma / jnp.sqrt(var + EPS)
        return scale, beta - mean * scale

    def cl(name):  # conv weight -> channels-last (Cin, Cout), bias (Cout,)
        w, b = p[name]
        return jnp.transpose(w[:, :, 0]), b

    sc1s, sh1s = fold_bn('bn1_s'); sc2s, sh2s = fold_bn('bn2_s')
    sc3s, sh3s = fold_bn('bn3_s'); scLs, shLs = fold_bn('bn_last_s')
    sc1, sh1 = fold_bn('bn1');     sc2, sh2 = fold_bn('bn2')
    sc3, sh3 = fold_bn('bn3');     scf, shf = fold_bn('bn_final')
    scb, shb = fold_bn('bn_bias')

    W1s, b1s = cl('conv1_s'); W2s, b2s = cl('conv2_s'); w3s, b3s = cl('conv3_s')
    W1, b1 = cl('conv1');     W2, b2 = cl('conv2');     W3, b3 = cl('conv3')
    wf, bf = cl('conv_final2')                       # (256, 1), (1,)
    wb, bb = cl('conv_bias')                         # (16, 1), (1,)
    WL = jnp.transpose(p['linear_s'][0])             # (LS, 128)
    bL = p['linear_s'][1]                            # (128,)

    # fold each post-matmul BN into the preceding conv's weights/bias
    W1s_f = W1s * sc2s[None, :]; b1s_f = b1s * sc2s + sh2s
    W2s_f = W2s * sc3s[None, :]; b2s_f = b2s * sc3s + sh3s
    W1_f = W1 * sc2[None, :];    b1_f = b1 * sc2 + sh2
    W2_f = W2 * sc3[None, :];    b2_f = b2 * sc3 + sh3

    # split bn_final + conv_final2 per branch and collapse them through
    # conv3 / linear_s (NO ReLU sits between them in the reference forward).
    wf_v = wf[:, 0]
    wvec_h = scf[:H3] * wf_v[:H3]                    # (128,)
    wvec_s = scf[H3:] * wf_v[H3:]                    # (128,)
    w3_eff = W3 @ wvec_h                             # conv3 collapsed -> (256,)
    wl_eff = WL @ wvec_s                             # linear_s collapsed -> (LS,)
    const_total = (b3 @ wvec_h + shf[:H3] @ wf_v[:H3]
                   + bL @ wvec_s + shf[H3:] @ wf_v[H3:] + bf[0])

    # bn_last_s is per-position: tile over batch, fold conv3_s bias into shift
    scL_t = jnp.tile(scLs, B)[:, None]                       # (B*LS, 1)
    shL_t = jnp.tile(b3s[0] * scLs + shLs, B)[:, None]       # (B*LS, 1)

    # segment matrix: out row b*N+n accumulates sum_l t[b*LS+l] * wl_eff[l]
    seg_out = jnp.repeat(jnp.arange(B), N)
    seg_in = jnp.repeat(jnp.arange(B), LS)
    M = ((seg_out[:, None] == seg_in[None, :]).astype(jnp.float32)
         * jnp.tile(wl_eff, B)[None, :])                     # (B*N, B*LS)

    def row(v):
        v = jnp.asarray(v, jnp.float32).reshape(-1)
        return jnp.pad(v, (0, ROWW - v.shape[0]))

    rows = jnp.stack([
        row(sc1s), row(sh1s), row(b1s_f), row(b2s_f),
        row(scb), row(shb), row(sc1), row(sh1), row(b1_f), row(b2_f),
        row(bb), row(const_total),
    ])                                                       # (12, 512)

    nrow = max(H2_S, BL_)
    def colpad(c):
        return jnp.pad(c, ((0, nrow - c.shape[0]), (0, 0)))
    subcol = jnp.concatenate([colpad(w3s), colpad(scL_t), colpad(shL_t)], axis=1)

    return dict(rows=rows,
                w1s=W1s_f.astype(WDT), w2s=W2s_f.astype(WDT),
                subcol=subcol, m=M, wbias=wb,
                w1=W1_f.astype(WDT), w2=W2_f.astype(WDT),
                w3e=w3_eff[:, None])


# --- pure-JAX reference mirroring the PyTorch code ----------------------------
def reference_forward(x, subset, p):
    hp = jax.lax.Precision.HIGHEST

    def conv1d(z, name):  # z: (B, C, L)
        w, b = p[name]
        return jnp.einsum('oi,bil->bol', w[:, :, 0], z, precision=hp) + b[None, :, None]

    def bn3d(z, name):
        g, be, m, v = p[name]
        return (z - m[None, :, None]) / jnp.sqrt(v[None, :, None] + EPS) * g[None, :, None] + be[None, :, None]

    def bn2d(z, name):
        g, be, m, v = p[name]
        return (z - m) / jnp.sqrt(v + EPS) * g + be

    relu = jax.nn.relu

    sub = jnp.transpose(subset, (0, 2, 1))
    sub = conv1d(relu(bn3d(sub, 'bn1_s')), 'conv1_s')
    sub = conv1d(relu(bn3d(sub, 'bn2_s')), 'conv2_s')
    sub = conv1d(relu(bn3d(sub, 'bn3_s')), 'conv3_s')      # (B, 1, LS)
    sub = sub.reshape(sub.shape[0], -1)                    # (B, LS)
    wl, bl = p['linear_s']
    sub = jnp.einsum('oi,bi->bo', wl, relu(bn2d(sub, 'bn_last_s')), precision=hp) + bl
    sub = jnp.repeat(sub[:, :, None], x.shape[1], axis=2)  # (B, 128, N)

    bias = conv1d(relu(bn3d(jnp.transpose(x[:, :, -SIM_SIZE:], (0, 2, 1)), 'bn_bias')), 'conv_bias')
    bias = jnp.transpose(bias, (0, 2, 1))                  # (B, N, 1)

    xm = jnp.transpose(x[:, :, :-SIM_SIZE], (0, 2, 1))
    xm = conv1d(relu(bn3d(xm, 'bn1')), 'conv1')
    xm = conv1d(relu(bn3d(xm, 'bn2')), 'conv2')
    xm = conv1d(relu(bn3d(xm, 'bn3')), 'conv3')            # (B, 128, N)
    out = jnp.concatenate([xm, sub], axis=1)               # (B, 256, N)
    out = conv1d(bn3d(out, 'bn_final'), 'conv_final2')     # (B, 1, N)
    res = jax.nn.sigmoid(bias) * jnp.transpose(out, (0, 2, 1))
    return res.reshape(res.shape[0], -1)


if __name__ == "__main__":
    key = jax.random.PRNGKey(0)
    kx, ksub, kp = jax.random.split(key, 3)
    x = jax.random.normal(kx, (B, N, FX), jnp.float32)
    subset = jax.random.normal(ksub, (B, LS, INPUT_SIZE), jnp.float32)

    params = init_params(kp)
    kps = kernel_params(params)

    out = jax.block_until_ready(qnet_forward(x, subset, kps))
    ref = reference_forward(x, subset, params)

    # f32 weights match the HIGHEST-precision reference to 2e-3; bf16 weight
    # quantization (perf-review item) needs a looser bound (observed err ~1e-2).
    tol = 2e-3 if WDT == jnp.float32 else 3e-2
    np.testing.assert_allclose(np.asarray(out), np.asarray(ref), rtol=tol, atol=tol)
    print("KERNEL_OK")
</pallas_src>

<mosaic_0001>
module attributes {stable_mosaic.version = 11 : i64} {
  func.func @_qnet_kernel(%arg0: memref<32x32xf32, #tpu.memory_space<vmem>>, %arg1: memref<32x16xf32, #tpu.memory_space<vmem>>, %arg2: memref<128x32xf32, #tpu.memory_space<vmem>>, %arg3: memref<12x512xf32, #tpu.memory_space<vmem>>, %arg4: memref<32x256xbf16, #tpu.memory_space<vmem>>, %arg5: memref<256x128xbf16, #tpu.memory_space<vmem>>, %arg6: memref<128x3xf32, #tpu.memory_space<vmem>>, %arg7: memref<32x128xf32, #tpu.memory_space<vmem>>, %arg8: memref<16x1xf32, #tpu.memory_space<vmem>>, %arg9: memref<32x512xbf16, #tpu.memory_space<vmem>>, %arg10: memref<512x256xbf16, #tpu.memory_space<vmem>>, %arg11: memref<256x1xf32, #tpu.memory_space<vmem>>, %arg12: memref<32x1xf32, #tpu.memory_space<vmem>>) attributes {dimension_semantics = [], scalar_prefetch = 0 : i64, scratch_operands = 0 : i64, tpu.core_type = #tpu.core_type<tc>} {
    %c0 = arith.constant 0 : index
    %c0_0 = arith.constant 0 : index
    %0 = vector.load %arg2[%c0, %c0_0] : memref<128x32xf32, #tpu.memory_space<vmem>>, vector<128x32xf32>
    %c0_1 = arith.constant 0 : index
    %c0_2 = arith.constant 0 : index
    %1 = vector.load %arg3[%c0_1, %c0_2] : memref<12x512xf32, #tpu.memory_space<vmem>>, vector<1x32xf32>
    %2 = vector.broadcast %1 : vector<1x32xf32> to vector<128x32xf32>
    %3 = arith.mulf %0, %2 : vector<128x32xf32>
    %c1 = arith.constant 1 : index
    %c0_3 = arith.constant 0 : index
    %4 = vector.load %arg3[%c1, %c0_3] : memref<12x512xf32, #tpu.memory_space<vmem>>, vector<1x32xf32>
    %5 = vector.broadcast %4 : vector<1x32xf32> to vector<128x32xf32>
    %6 = arith.addf %3, %5 : vector<128x32xf32>
    %cst = arith.constant 0.000000e+00 : f32
    %7 = vector.broadcast %cst : f32 to vector<128x32xf32>
    %8 = arith.maximumf %6, %7 : vector<128x32xf32>
    %9 = arith.truncf %8 : vector<128x32xf32> to vector<128x32xbf16>
    %c0_4 = arith.constant 0 : index
    %c0_5 = arith.constant 0 : index
    %10 = vector.load %arg4[%c0_4, %c0_5] : memref<32x256xbf16, #tpu.memory_space<vmem>>, vector<32x256xbf16>
    %cst_6 = arith.constant dense<0.000000e+00> : vector<128x256xf32>
    %11 = tpu.matmul %9, %10, %cst_6 {dimension_numbers = #tpu.dot_dimension_numbers<[1], [0], [0], [1], [0, 0, 1, 1], [], []>} : vector<128x32xbf16>, vector<32x256xbf16>, vector<128x256xf32> -> vector<128x256xf32>
    %c2 = arith.constant 2 : index
    %c0_7 = arith.constant 0 : index
    %12 = vector.load %arg3[%c2, %c0_7] : memref<12x512xf32, #tpu.memory_space<vmem>>, vector<1x256xf32>
    %13 = vector.broadcast %12 : vector<1x256xf32> to vector<128x256xf32>
    %14 = arith.addf %11, %13 : vector<128x256xf32>
    %cst_8 = arith.constant 0.000000e+00 : f32
    %15 = vector.broadcast %cst_8 : f32 to vector<128x256xf32>
    %16 = arith.maximumf %14, %15 : vector<128x256xf32>
    %17 = arith.truncf %16 : vector<128x256xf32> to vector<128x256xbf16>
    %c0_9 = arith.constant 0 : index
    %c0_10 = arith.constant 0 : index
    %18 = vector.load %arg5[%c0_9, %c0_10] : memref<256x128xbf16, #tpu.memory_space<vmem>>, vector<256x128xbf16>
    %cst_11 = arith.constant dense<0.000000e+00> : vector<128x128xf32>
    %19 = tpu.matmul %17, %18, %cst_11 {dimension_numbers = #tpu.dot_dimension_numbers<[1], [0], [0], [1], [0, 0, 1, 1], [], []>} : vector<128x256xbf16>, vector<256x128xbf16>, vector<128x128xf32> -> vector<128x128xf32>
    %c3 = arith.constant 3 : index
    %c0_12 = arith.constant 0 : index
    %20 = vector.load %arg3[%c3, %c0_12] : memref<12x512xf32, #tpu.memory_space<vmem>>, vector<1x128xf32>
    %21 = vector.broadcast %20 : vector<1x128xf32> to vector<128x128xf32>
    %22 = arith.addf %19, %21 : vector<128x128xf32>
    %cst_13 = arith.constant 0.000000e+00 : f32
    %23 = vector.broadcast %cst_13 : f32 to vector<128x128xf32>
    %24 = arith.maximumf %22, %23 : vector<128x128xf32>
    %c0_14 = arith.constant 0 : index
    %c0_15 = arith.constant 0 : index
    %25 = vector.load %arg6[%c0_14, %c0_15] : memref<128x3xf32, #tpu.memory_space<vmem>>, vector<128x1xf32>
    %cst_16 = arith.constant dense<0.000000e+00> : vector<128x1xf32>
    %26 = tpu.matmul %24, %25, %cst_16 {dimension_numbers = #tpu.dot_dimension_numbers<[1], [0], [0], [1], [0, 0, 1, 1], [], []>} : vector<128x128xf32>, vector<128x1xf32>, vector<128x1xf32> -> vector<128x1xf32>
    %c0_17 = arith.constant 0 : index
    %c1_18 = arith.constant 1 : index
    %27 = vector.load %arg6[%c0_17, %c1_18] : memref<128x3xf32, #tpu.memory_space<vmem>>, vector<128x1xf32>
    %28 = arith.mulf %26, %27 : vector<128x1xf32>
    %c0_19 = arith.constant 0 : index
    %c2_20 = arith.constant 2 : index
    %29 = vector.load %arg6[%c0_19, %c2_20] : memref<128x3xf32, #tpu.memory_space<vmem>>, vector<128x1xf32>
    %30 = arith.addf %28, %29 : vector<128x1xf32>
    %cst_21 = arith.constant 0.000000e+00 : f32
    %31 = vector.broadcast %cst_21 : f32 to vector<128x1xf32>
    %32 = arith.maximumf %30, %31 : vector<128x1xf32>
    %c0_22 = arith.constant 0 : index
    %c0_23 = arith.constant 0 : index
    %33 = vector.load %arg7[%c0_22, %c0_23] : memref<32x128xf32, #tpu.memory_space<vmem>>, vector<32x128xf32>
    %cst_24 = arith.constant dense<0.000000e+00> : vector<32x1xf32>
    %34 = tpu.matmul %33, %32, %cst_24 {dimension_numbers = #tpu.dot_dimension_numbers<[1], [0], [0], [1], [0, 0, 1, 1], [], []>} : vector<32x128xf32>, vector<128x1xf32>, vector<32x1xf32> -> vector<32x1xf32>
    %c0_25 = arith.constant 0 : index
    %c0_26 = arith.constant 0 : index
    %35 = vector.load %arg1[%c0_25, %c0_26] : memref<32x16xf32, #tpu.memory_space<vmem>>, vector<32x16xf32>
    %c4 = arith.constant 4 : index
    %c0_27 = arith.constant 0 : index
    %36 = vector.load %arg3[%c4, %c0_27] : memref<12x512xf32, #tpu.memory_space<vmem>>, vector<1x16xf32>
    %37 = vector.broadcast %36 : vector<1x16xf32> to vector<32x16xf32>
    %38 = arith.mulf %35, %37 : vector<32x16xf32>
    %c5 = arith.constant 5 : index
    %c0_28 = arith.constant 0 : index
    %39 = vector.load %arg3[%c5, %c0_28] : memref<12x512xf32, #tpu.memory_space<vmem>>, vector<1x16xf32>
    %40 = vector.broadcast %39 : vector<1x16xf32> to vector<32x16xf32>
    %41 = arith.addf %38, %40 : vector<32x16xf32>
    %cst_29 = arith.constant 0.000000e+00 : f32
    %42 = vector.broadcast %cst_29 : f32 to vector<32x16xf32>
    %43 = arith.maximumf %41, %42 : vector<32x16xf32>
    %c0_30 = arith.constant 0 : index
    %c0_31 = arith.constant 0 : index
    %44 = vector.load %arg8[%c0_30, %c0_31] : memref<16x1xf32, #tpu.memory_space<vmem>>, vector<16x1xf32>
    %cst_32 = arith.constant dense<0.000000e+00> : vector<32x1xf32>
    %45 = tpu.matmul %43, %44, %cst_32 {dimension_numbers = #tpu.dot_dimension_numbers<[1], [0], [0], [1], [0, 0, 1, 1], [], []>} : vector<32x16xf32>, vector<16x1xf32>, vector<32x1xf32> -> vector<32x1xf32>
    %c10 = arith.constant 10 : index
    %c0_33 = arith.constant 0 : index
    %46 = vector.load %arg3[%c10, %c0_33] : memref<12x512xf32, #tpu.memory_space<vmem>>, vector<1x1xf32>
    %47 = vector.broadcast %46 : vector<1x1xf32> to vector<32x1xf32>
    %48 = arith.addf %45, %47 : vector<32x1xf32>
    %c0_34 = arith.constant 0 : index
    %c0_35 = arith.constant 0 : index
    %49 = vector.load %arg0[%c0_34, %c0_35] : memref<32x32xf32, #tpu.memory_space<vmem>>, vector<32x32xf32>
    %c6 = arith.constant 6 : index
    %c0_36 = arith.constant 0 : index
    %50 = vector.load %arg3[%c6, %c0_36] : memref<12x512xf32, #tpu.memory_space<vmem>>, vector<1x32xf32>
    %51 = vector.broadcast %50 : vector<1x32xf32> to vector<32x32xf32>
    %52 = arith.mulf %49, %51 : vector<32x32xf32>
    %c7 = arith.constant 7 : index
    %c0_37 = arith.constant 0 : index
    %53 = vector.load %arg3[%c7, %c0_37] : memref<12x512xf32, #tpu.memory_space<vmem>>, vector<1x32xf32>
    %54 = vector.broadcast %53 : vector<1x32xf32> to vector<32x32xf32>
    %55 = arith.addf %52, %54 : vector<32x32xf32>
    %cst_38 = arith.constant 0.000000e+00 : f32
    %56 = vector.broadcast %cst_38 : f32 to vector<32x32xf32>
    %57 = arith.maximumf %55, %56 : vector<32x32xf32>
    %58 = arith.truncf %57 : vector<32x32xf32> to vector<32x32xbf16>
    %c0_39 = arith.constant 0 : index
    %c0_40 = arith.constant 0 : index
    %59 = vector.load %arg9[%c0_39, %c0_40] : memref<32x512xbf16, #tpu.memory_space<vmem>>, vector<32x512xbf16>
    %cst_41 = arith.constant dense<0.000000e+00> : vector<32x512xf32>
    %60 = tpu.matmul %58, %59, %cst_41 {dimension_numbers = #tpu.dot_dimension_numbers<[1], [0], [0], [1], [0, 0, 1, 1], [], []>} : vector<32x32xbf16>, vector<32x512xbf16>, vector<32x512xf32> -> vector<32x512xf32>
    %c8 = arith.constant 8 : index
    %c0_42 = arith.constant 0 : index
    %61 = vector.load %arg3[%c8, %c0_42] : memref<12x512xf32, #tpu.memory_space<vmem>>, vector<1x512xf32>
    %62 = vector.broadcast %61 : vector<1x512xf32> to vector<32x512xf32>
    %63 = arith.addf %60, %62 : vector<32x512xf32>
    %cst_43 = arith.constant 0.000000e+00 : f32
    %64 = vector.broadcast %cst_43 : f32 to vector<32x512xf32>
    %65 = arith.maximumf %63, %64 : vector<32x512xf32>
    %66 = arith.truncf %65 : vector<32x512xf32> to vector<32x512xbf16>
    %c0_44 = arith.constant 0 : index
    %c0_45 = arith.constant 0 : index
    %67 = vector.load %arg10[%c0_44, %c0_45] : memref<512x256xbf16, #tpu.memory_space<vmem>>, vector<512x256xbf16>
    %cst_46 = arith.constant dense<0.000000e+00> : vector<32x256xf32>
    %68 = tpu.matmul %66, %67, %cst_46 {dimension_numbers = #tpu.dot_dimension_numbers<[1], [0], [0], [1], [0, 0, 1, 1], [], []>} : vector<32x512xbf16>, vector<512x256xbf16>, vector<32x256xf32> -> vector<32x256xf32>
    %c9 = arith.constant 9 : index
    %c0_47 = arith.constant 0 : index
    %69 = vector.load %arg3[%c9, %c0_47] : memref<12x512xf32, #tpu.memory_space<vmem>>, vector<1x256xf32>
    %70 = vector.broadcast %69 : vector<1x256xf32> to vector<32x256xf32>
    %71 = arith.addf %68, %70 : vector<32x256xf32>
    %cst_48 = arith.constant 0.000000e+00 : f32
    %72 = vector.broadcast %cst_48 : f32 to vector<32x256xf32>
    %73 = arith.maximumf %71, %72 : vector<32x256xf32>
    %c0_49 = arith.constant 0 : index
    %c0_50 = arith.constant 0 : index
    %74 = vector.load %arg11[%c0_49, %c0_50] : memref<256x1xf32, #tpu.memory_space<vmem>>, vector<256x1xf32>
    %cst_51 = arith.constant dense<0.000000e+00> : vector<32x1xf32>
    %75 = tpu.matmul %73, %74, %cst_51 {dimension_numbers = #tpu.dot_dimension_numbers<[1], [0], [0], [1], [0, 0, 1, 1], [], []>} : vector<32x256xf32>, vector<256x1xf32>, vector<32x1xf32> -> vector<32x1xf32>
    %76 = arith.addf %75, %34 : vector<32x1xf32>
    %c11 = arith.constant 11 : index
    %c0_52 = arith.constant 0 : index
    %77 = vector.load %arg3[%c11, %c0_52] : memref<12x512xf32, #tpu.memory_space<vmem>>, vector<1x1xf32>
    %78 = vector.broadcast %77 : vector<1x1xf32> to vector<32x1xf32>
    %79 = arith.addf %76, %78 : vector<32x1xf32>
    %80 = arith.negf %48 : vector<32x1xf32>
    %81 = math.exp %80 : vector<32x1xf32>
    %cst_53 = arith.constant 1.000000e+00 : f32
    %82 = vector.broadcast %cst_53 : f32 to vector<32x1xf32>
    %83 = arith.addf %82, %81 : vector<32x1xf32>
    %84 = arith.divf %82, %83 : vector<32x1xf32>
    %85 = arith.mulf %84, %79 : vector<32x1xf32>
    %c0_54 = arith.constant 0 : index
    %c0_55 = arith.constant 0 : index
    %86 = vector.load %arg12[%c0_54, %c0_55] : memref<32x1xf32, #tpu.memory_space<vmem>>, vector<32x1xf32>
    tpu.vector_store %arg12[%c0_54, %c0_55], %85 {strides = array<i32>} : memref<32x1xf32, #tpu.memory_space<vmem>>, vector<32x1xf32>,
    return
  }
}

</mosaic_0001>

<llo_original>
// kernel: qnet_forward.1
$region0: #{qnet_forward.1}
  #allocation0 [shape = 'u32[]', space=smem, size = 0x4, offset = 0x4, fixed_abs, tag = 'smem constant byte address 0x4 - core index']
  #allocation1 [shape = 'u32[144,128]{1,0:T(1,128)}', space=vmem, size = 0x12000, scoped, tag = 'internal scratch']
  %s0 = inlined_call_operand.vmem [shape: f32[32,32], index: 0, kind: input, shape index: {}]
  %s1 = inlined_call_operand.vmem [shape: f32[32,16], index: 1, kind: input, shape index: {}]
  %s2 = inlined_call_operand.vmem [shape: f32[128,32], index: 2, kind: input, shape index: {}]
  %s3 = inlined_call_operand.hbm [shape: f32[12,512], index: 3, kind: input, shape index: {}]
  %s4 = inlined_call_operand.vmem [shape: bf16[32,256], index: 4, kind: input, shape index: {}]
  %s5 = inlined_call_operand.vmem [shape: bf16[256,128], index: 5, kind: input, shape index: {}]
  %s6 = inlined_call_operand.vmem [shape: f32[128,3], index: 6, kind: input, shape index: {}]
  %s7 = inlined_call_operand.hbm [shape: f32[32,128], index: 7, kind: input, shape index: {}]
  %s8 = inlined_call_operand.vmem [shape: f32[16,1], index: 8, kind: input, shape index: {}]
  %s9 = inlined_call_operand.hbm [shape: bf16[32,512], index: 9, kind: input, shape index: {}]
  %s10 = inlined_call_operand.vmem [shape: bf16[512,256], index: 10, kind: input, shape index: {}]
  %s11 = inlined_call_operand.vmem [shape: f32[256,1], index: 11, kind: input, shape index: {}]
  %s12 = inlined_call_operand.vmem [shape: f32[32,1], index: 12, kind: output, shape index: {}]
  %s13 = sld [smem:[#allocation0]]
  $region70: #{qnet_forward.1} parent=0
    _
  %s15 = ssub.s32 1, %s13
  %s16 = scalar_select 0, %s15, %s13
  $region1: #{qnet_forward.1} parent=0
    #allocation2 [shape = 'u8[32768]{0}', space=vmem, size = 0x8000, scoped, tag = 'input window, operand 3, single buffered']
    #allocation3 [shape = 's32[1]{0}', space=sflag, size = 0x4, scoped, tag = 'scoped memory for qnet_forward.1']
    #allocation4 [shape = 'u8[16384]{0}', space=vmem, size = 0x4000, scoped, tag = 'input window, operand 7, single buffered']
    #allocation5 [shape = 's32[1]{0}', space=sflag, size = 0x4, scoped, tag = 'scoped memory for qnet_forward.1']
    #allocation6 [shape = 'u8[32768]{0}', space=vmem, size = 0x8000, scoped, tag = 'input window, operand 9, single buffered']
    %17 = vsyncpa [#allocation3], 0
    %18 = vsyncpa [#allocation5], 0
    // Predicated region
    $region2: #{qnet_forward.1} parent=1 // pred_check
      _
    $region3: #{qnet_forward.1} parent=1 // pred_check_branch
      %20 = sbr.rel (0) target = $region5
    $region4: #{qnet_forward.1} parent=1 // pred_region
      _
    $region5: #{qnet_forward.1} parent=1 // pred_fallthru
      _
    // Predicated region
    $region6: #{qnet_forward.1} parent=1 // pred_check
      _
    $region7: #{qnet_forward.1} parent=1 // pred_check_branch
      %22 = sbr.rel (0) target = $region9
    $region8: #{qnet_forward.1} parent=1 // pred_region
      _
    $region9: #{qnet_forward.1} parent=1 // pred_fallthru
      _
    // Predicated region
    $region10: #{qnet_forward.1} parent=1 // pred_check
      _
    $region11: #{qnet_forward.1} parent=1 // pred_check_branch
      %24 = sbr.rel (0) target = $region13
    $region12: #{qnet_forward.1} parent=1 // pred_region
      _
    $region13: #{qnet_forward.1} parent=1 // pred_fallthru
      _
    // Predicated region
    $region14: #{qnet_forward.1} parent=1 // pred_check
      _
    $region15: #{qnet_forward.1} parent=1 // pred_check_branch
      %26 = sbr.rel (0) target = $region17
    $region16: #{qnet_forward.1} parent=1 // pred_region
      %s28 = ssub.s32 1024, 1024
      %29 = vsyncadd [#allocation3], %s28
      %s30 = sshll.u32 [#allocation2], 4
      %s31 = int_to_ptr.vmem [resolvable:$true] %s30
      %36 = dma.hbm_to_vmem [thread:$0]  %s3, 1024, %s31, [#allocation3], 512, 512, 32
    $region17: #{qnet_forward.1} parent=1 // pred_fallthru
      _
    // Predicated region
    $region18: #{qnet_forward.1} parent=1 // pred_check
      _
    $region19: #{qnet_forward.1} parent=1 // pred_check_branch
      %38 = sbr.rel (0) target = $region21
    $region20: #{qnet_forward.1} parent=1 // pred_region
      _
    $region21: #{qnet_forward.1} parent=1 // pred_fallthru
      _
    // Predicated region
    $region22: #{qnet_forward.1} parent=1 // pred_check
      _
    $region23: #{qnet_forward.1} parent=1 // pred_check_branch
      %40 = sbr.rel (0) target = $region25
    $region24: #{qnet_forward.1} parent=1 // pred_region
      _
    $region25: #{qnet_forward.1} parent=1 // pred_fallthru
      _
    // Predicated region
    $region26: #{qnet_forward.1} parent=1 // pred_check
      _
    $region27: #{qnet_forward.1} parent=1 // pred_check_branch
      %42 = sbr.rel (0) target = $region29
    $region28: #{qnet_forward.1} parent=1 // pred_region
      _
    $region29: #{qnet_forward.1} parent=1 // pred_fallthru
      _
    // Predicated region
    $region30: #{qnet_forward.1} parent=1 // pred_check
      _
    $region31: #{qnet_forward.1} parent=1 // pred_check_branch
      %44 = sbr.rel (0) target = $region33
    $region32: #{qnet_forward.1} parent=1 // pred_region
      %s46 = ssub.s32 512, 512
      %47 = vsyncadd [#allocation5], %s46
      %s48 = sshll.u32 [#allocation4], 4
      %s49 = int_to_ptr.vmem [resolvable:$true] %s48
      %54 = dma.hbm_to_vmem [thread:$0]  %s7, 512, %s49, [#allocation5], 128, 128, 8
    $region33: #{qnet_forward.1} parent=1 // pred_fallthru
      _
    // Predicated region
    $region34: #{qnet_forward.1} parent=1 // pred_check
      _
    $region35: #{qnet_forward.1} parent=1 // pred_check_branch
      %56 = sbr.rel (0) target = $region37
    $region36: #{qnet_forward.1} parent=1 // pred_region
      _
    $region37: #{qnet_forward.1} parent=1 // pred_fallthru
      _
    // Predicated region
    $region38: #{qnet_forward.1} parent=1 // pred_check
      _
    $region39: #{qnet_forward.1} parent=1 // pred_check_branch
      %58 = sbr.rel (0) target = $region41
    $region40: #{qnet_forward.1} parent=1 // pred_region
      %s60 = ssub.s32 1024, 1024
      %61 = vsyncadd [#allocation5], %s60
      %s62 = sshll.u32 [#allocation6], 4
      %s63 = int_to_ptr.vmem [resolvable:$true] %s62
      %68 = dma.hbm_to_vmem [thread:$0]  %s9, 1024, %s63, [#allocation5], 256, 256, 16
    $region41: #{qnet_forward.1} parent=1 // pred_fallthru
      _
    // Predicated region
    $region42: #{qnet_forward.1} parent=1 // pred_check
      _
    $region43: #{qnet_forward.1} parent=1 // pred_check_branch
      %70 = sbr.rel (0) target = $region45
    $region44: #{qnet_forward.1} parent=1 // pred_region
      _
    $region45: #{qnet_forward.1} parent=1 // pred_fallthru
      _
    // Predicated region
    $region46: #{qnet_forward.1} parent=1 // pred_check
      _
    $region47: #{qnet_forward.1} parent=1 // pred_check_branch
      %72 = sbr.rel (0) target = $region49
    $region48: #{qnet_forward.1} parent=1 // pred_region
      _
    $region49: #{qnet_forward.1} parent=1 // pred_fallthru
      _
    // Predicated region
    $region50: #{qnet_forward.1} parent=1 // pred_check
      _
    $region51: #{qnet_forward.1} parent=1 // pred_check_branch
      %74 = sbr.rel (0) target = $region53
    $region52: #{qnet_forward.1} parent=1 // pred_region
      %75 = dma.done [#allocation3], 1024
    $region53: #{qnet_forward.1} parent=1 // pred_fallthru
      _
    // Predicated region
    $region54: #{qnet_forward.1} parent=1 // pred_check
      _
    $region55: #{qnet_forward.1} parent=1 // pred_check_branch
      %77 = sbr.rel (0) target = $region57
    $region56: #{qnet_forward.1} parent=1 // pred_region
      %78 = dma.done [#allocation5], 512
    $region57: #{qnet_forward.1} parent=1 // pred_fallthru
      _
    // Predicated region
    $region58: #{qnet_forward.1} parent=1 // pred_check
      _
    $region59: #{qnet_forward.1} parent=1 // pred_check_branch
      %80 = sbr.rel (0) target = $region61
    $region60: #{qnet_forward.1} parent=1 // pred_region
      %81 = dma.done [#allocation5], 1024
    $region61: #{qnet_forward.1} parent=1 // pred_fallthru
      _
    %v83 = vld [vmem:[%s2] sm:$0xff]
    %v84 = vld [vmem:[%s2 + $0x8] sm:$0xff]
    %v85 = vld [vmem:[%s2 + $0x10] sm:$0xff]
    %v86 = vld [vmem:[%s2 + $0x18] sm:$0xff]
    %v87 = vld [vmem:[%s2 + $0x20] sm:$0xff]
    %v88 = vld [vmem:[%s2 + $0x28] sm:$0xff]
    %v89 = vld [vmem:[%s2 + $0x30] sm:$0xff]
    %v90 = vld [vmem:[%s2 + $0x38] sm:$0xff]
    %v91 = vld [vmem:[%s2 + $0x40] sm:$0xff]
    %v92 = vld [vmem:[%s2 + $0x48] sm:$0xff]
    %v93 = vld [vmem:[%s2 + $0x50] sm:$0xff]
    %v94 = vld [vmem:[%s2 + $0x58] sm:$0xff]
    %v95 = vld [vmem:[%s2 + $0x60] sm:$0xff]
    %v96 = vld [vmem:[%s2 + $0x68] sm:$0xff]
    %v97 = vld [vmem:[%s2 + $0x70] sm:$0xff]
    %v98 = vld [vmem:[%s2 + $0x78] sm:$0xff]
    %v99 = vld [vmem:[#allocation2] ss:$0 sm:$0xff]
    %v100 = vmul.f32 %v83, %v99
    %v101 = vmul.f32 %v84, %v99
    %v102 = vmul.f32 %v85, %v99
    %v103 = vmul.f32 %v86, %v99
    %v104 = vmul.f32 %v87, %v99
    %v105 = vmul.f32 %v88, %v99
    %v106 = vmul.f32 %v89, %v99
    %v107 = vmul.f32 %v90, %v99
    %v108 = vmul.f32 %v91, %v99
    %v109 = vmul.f32 %v92, %v99
    %v110 = vmul.f32 %v93, %v99
    %v111 = vmul.f32 %v94, %v99
    %v112 = vmul.f32 %v95, %v99
    %v113 = vmul.f32 %v96, %v99
    %v114 = vmul.f32 %v97, %v99
    %v115 = vmul.f32 %v98, %v99
    %v116 = vld [vmem:[#allocation2 + $0x1] ss:$0 sm:$0xff]
    %v117 = vadd.f32 %v100, %v116
    %v118 = vadd.f32 %v101, %v116
    %v119 = vadd.f32 %v102, %v116
    %v120 = vadd.f32 %v103, %v116
    %v121 = vadd.f32 %v104, %v116
    %v122 = vadd.f32 %v105, %v116
    %v123 = vadd.f32 %v106, %v116
    %v124 = vadd.f32 %v107, %v116
    %v125 = vadd.f32 %v108, %v116
    %v126 = vadd.f32 %v109, %v116
    %v127 = vadd.f32 %v110, %v116
    %v128 = vadd.f32 %v111, %v116
    %v129 = vadd.f32 %v112, %v116
    %v130 = vadd.f32 %v113, %v116
    %v131 = vadd.f32 %v114, %v116
    %v132 = vadd.f32 %v115, %v116
    %v133 = vmax.f32 %v117, 0.0
    %v134 = vmax.f32 %v118, 0.0
    %v135 = vmax.f32 %v119, 0.0
    %v136 = vmax.f32 %v120, 0.0
    %v137 = vmax.f32 %v121, 0.0
    %v138 = vmax.f32 %v122, 0.0
    %v139 = vmax.f32 %v123, 0.0
    %v140 = vmax.f32 %v124, 0.0
    %v141 = vmax.f32 %v125, 0.0
    %v142 = vmax.f32 %v126, 0.0
    %v143 = vmax.f32 %v127, 0.0
    %v144 = vmax.f32 %v128, 0.0
    %v145 = vmax.f32 %v129, 0.0
    %v146 = vmax.f32 %v130, 0.0
    %v147 = vmax.f32 %v131, 0.0
    %v148 = vmax.f32 %v132, 0.0
    %v149 = vpack.c.bf16 %v134, %v133
    %v150 = vpack.c.bf16 %v136, %v135
    %v151 = vpack.c.bf16 %v138, %v137
    %v152 = vpack.c.bf16 %v140, %v139
    %v153 = vpack.c.bf16 %v142, %v141
    %v154 = vpack.c.bf16 %v144, %v143
    %v155 = vpack.c.bf16 %v146, %v145
    %v156 = vpack.c.bf16 %v148, %v147
    %v157 = vld [vmem:[%s4] sm:$0xff]
    %v158 = vld [vmem:[%s4 + $0x8] sm:$0xff]
    %v159 = vld [vmem:[%s4 + $0x10] sm:$0xff]
    %v160 = vld [vmem:[%s4 + $0x18] sm:$0xff]
    %s161 = scalar_lea.vmem [#allocation2], 2
    %v162 = vld [vmem:[%s161] ss:$8 sm:$0x3]
    %v164 = vlaneseq
    %v165 = vshrl.u32 %v164, 7
    %v166 = vsub.s32 0, %v165
    %v167 = vrot.slane %v162, %v166
    %v168 = vlaneseq
    %v169 = vshrl.u32 %v168, 7
    %v170 = vsub.s32 1, %v169
    %v171 = vrot.slane %v162, %v170
    %v178 = vunpack.c.l.b16 %v157
    %v179 = vunpack.c.h.b16 %v157
    %v180 = vunpack.c.l.b16 %v158
    %v181 = vunpack.c.h.b16 %v158
    %v182 = vunpack.c.l.b16 %v159
    %v183 = vunpack.c.h.b16 %v159
    %v184 = vunpack.c.l.b16 %v160
    %v185 = vunpack.c.h.b16 %v160
    %v186 = vpack.c.b16 %v180, %v178
    %v187 = vpack.c.b16 %v181, %v179
    %v188 = vpack.c.b16 %v184, %v182
    %v189 = vpack.c.b16 %v185, %v183
    %vm194 = vcmask 261120
    %v196 = vsel %vm194, %v149, 0
    %v199 = vsel %vm194, %v150, 0
    %v202 = vsel %vm194, %v151, 0
    %v205 = vsel %vm194, %v152, 0
    %v208 = vsel %vm194, %v153, 0
    %v211 = vsel %vm194, %v154, 0
    %v214 = vsel %vm194, %v155, 0
    %v217 = vsel %vm194, %v156, 0
    %219 = vmatprep.subr.bf16.mxu0 %v187
    %220 = vmatpush1.bf16.msra.mxu0 %v186
    %221 = vmatprep.subr.bf16.mxu0 %v189
    %222 = vmatpush1.bf16.msra.mxu0 %v188
    %223 = vmatprep.subr.bf16.mxu0 0
    %224 = vmatpush1.bf16.msra.mxu0 0
    %225 = vmatprep.subr.bf16.mxu0 0
    %226 = vmatpush1.bf16.msra.mxu0 0
    %227 = vmatprep.subr.bf16.mxu0 0
    %228 = vmatpush1.bf16.msra.mxu0 0
    %229 = vmatprep.subr.bf16.mxu0 0
    %230 = vmatpush1.bf16.msra.mxu0 0
    %231 = vmatprep.subr.bf16.mxu0 0
    %232 = vmatpush1.bf16.msra.mxu0 0
    %233 = vmatprep.subr.bf16.mxu0 0
    %234 = vmatpush1.bf16.msra.mxu0 0
    %235 = vmatprep.subr.bf16.mxu0 0
    %236 = vmatpush1.bf16.msra.mxu0 0
    %237 = vmatprep.subr.bf16.mxu0 0
    %238 = vmatpush1.bf16.msra.mxu0 0
    %239 = vmatprep.subr.bf16.mxu0 0
    %240 = vmatpush1.bf16.msra.mxu0 0
    %241 = vmatprep.subr.bf16.mxu0 0
    %242 = vmatpush1.bf16.msra.mxu0 0
    %243 = vmatprep.subr.bf16.mxu0 0
    %244 = vmatpush1.bf16.msra.mxu0 0
    %245 = vmatprep.subr.bf16.mxu0 0
    %246 = vmatpush1.bf16.msra.mxu0 0
    %247 = vmatprep.subr.bf16.mxu0 0
    %248 = vmatpush1.bf16.msra.mxu0 0
    %249 = vmatprep.subr.bf16.mxu0 0
    %250 = vmatpush1.bf16.msra.mxu0 0
    %251 = vmatprep.mubr.bf16.mxu0 0
    %252 = vmatmul.mubr.bf16.gmra.mrb[0].mxu0 %v196
    %v253 = vpop.f32.mrb[0].mxu0
    %v254 = vadd.f32 %v167, %v253
    %v255 = vpop.f32.mrb[0].mxu0
    %v256 = vadd.f32 %v171, %v255
    %v257 = vpop.f32.mrb[0].mxu0
    %v258 = vadd.f32 %v167, %v257
    %v259 = vpop.f32.mrb[0].mxu0
    %v260 = vadd.f32 %v171, %v259
    %261 = vmatprep.mubr.bf16.mxu0 0
    %262 = vmatmul.mubr.bf16.gmra.mrb[0].mxu0 %v199
    %v263 = vpop.f32.mrb[0].mxu0
    %v264 = vadd.f32 %v167, %v263
    %v265 = vpop.f32.mrb[0].mxu0
    %v266 = vadd.f32 %v171, %v265
    %v267 = vpop.f32.mrb[0].mxu0
    %v268 = vadd.f32 %v167, %v267
    %v269 = vpop.f32.mrb[0].mxu0
    %v270 = vadd.f32 %v171, %v269
    %271 = vmatprep.mubr.bf16.mxu0 0
    %272 = vmatmul.mubr.bf16.gmra.mrb[0].mxu0 %v202
    %v273 = vpop.f32.mrb[0].mxu0
    %v274 = vadd.f32 %v167, %v273
    %v275 = vpop.f32.mrb[0].mxu0
    %v276 = vadd.f32 %v171, %v275
    %v277 = vpop.f32.mrb[0].mxu0
    %v278 = vadd.f32 %v167, %v277
    %v279 = vpop.f32.mrb[0].mxu0
    %v280 = vadd.f32 %v171, %v279
    %281 = vmatprep.mubr.bf16.mxu0 0
    %282 = vmatmul.mubr.bf16.gmra.mrb[0].mxu0 %v205
    %v283 = vpop.f32.mrb[0].mxu0
    %v284 = vadd.f32 %v167, %v283
    %v285 = vpop.f32.mrb[0].mxu0
    %v286 = vadd.f32 %v171, %v285
    %v287 = vpop.f32.mrb[0].mxu0
    %v288 = vadd.f32 %v167, %v287
    %v289 = vpop.f32.mrb[0].mxu0
    %v290 = vadd.f32 %v171, %v289
    %291 = vmatprep.mubr.bf16.mxu0 0
    %292 = vmatmul.mubr.bf16.gmra.mrb[0].mxu0 %v208
    %v293 = vpop.f32.mrb[0].mxu0
    %v294 = vadd.f32 %v167, %v293
    %v295 = vpop.f32.mrb[0].mxu0
    %v296 = vadd.f32 %v171, %v295
    %v297 = vpop.f32.mrb[0].mxu0
    %v298 = vadd.f32 %v167, %v297
    %v299 = vpop.f32.mrb[0].mxu0
    %v300 = vadd.f32 %v171, %v299
    %301 = vmatprep.mubr.bf16.mxu0 0
    %302 = vmatmul.mubr.bf16.gmra.mrb[0].mxu0 %v211
    %v303 = vpop.f32.mrb[0].mxu0
    %v304 = vadd.f32 %v167, %v303
    %v305 = vpop.f32.mrb[0].mxu0
    %v306 = vadd.f32 %v171, %v305
    %v307 = vpop.f32.mrb[0].mxu0
    %v308 = vadd.f32 %v167, %v307
    %v309 = vpop.f32.mrb[0].mxu0
    %v310 = vadd.f32 %v171, %v309
    %311 = vmatprep.mubr.bf16.mxu0 0
    %312 = vmatmul.mubr.bf16.gmra.mrb[0].mxu0 %v214
    %v313 = vpop.f32.mrb[0].mxu0
    %v314 = vadd.f32 %v167, %v313
    %v315 = vpop.f32.mrb[0].mxu0
    %v316 = vadd.f32 %v171, %v315
    %v317 = vpop.f32.mrb[0].mxu0
    %v318 = vadd.f32 %v167, %v317
    %v319 = vpop.f32.mrb[0].mxu0
    %v320 = vadd.f32 %v171, %v319
    %321 = vmatprep.mubr.bf16.mxu0 0
    %322 = vmatmul.mubr.bf16.gmra.mrb[0].mxu0 %v217
    %v323 = vpop.f32.mrb[0].mxu0
    %v324 = vadd.f32 %v167, %v323
    %v325 = vpop.f32.mrb[0].mxu0
    %v326 = vadd.f32 %v171, %v325
    %v327 = vpop.f32.mrb[0].mxu0
    %v328 = vadd.f32 %v167, %v327
    %v329 = vpop.f32.mrb[0].mxu0
    %v330 = vadd.f32 %v171, %v329
    %331 = vdwg.mxu0
    %v332 = vmax.f32 %v254, 0.0
    %v333 = vmax.f32 %v256, 0.0
    %v334 = vmax.f32 %v258, 0.0
    %v335 = vmax.f32 %v260, 0.0
    %v336 = vmax.f32 %v264, 0.0
    %v337 = vmax.f32 %v266, 0.0
    %v338 = vmax.f32 %v268, 0.0
    %v339 = vmax.f32 %v270, 0.0
    %v340 = vmax.f32 %v274, 0.0
    %v341 = vmax.f32 %v276, 0.0
    %v342 = vmax.f32 %v278, 0.0
    %v343 = vmax.f32 %v280, 0.0
    %v344 = vmax.f32 %v284, 0.0
    %v345 = vmax.f32 %v286, 0.0
    %v346 = vmax.f32 %v288, 0.0
    %v347 = vmax.f32 %v290, 0.0
    %v348 = vmax.f32 %v294, 0.0
    %v349 = vmax.f32 %v296, 0.0
    %v350 = vmax.f32 %v298, 0.0
    %v351 = vmax.f32 %v300, 0.0
    %v352 = vmax.f32 %v304, 0.0
    %v353 = vmax.f32 %v306, 0.0
    %v354 = vmax.f32 %v308, 0.0
    %v355 = vmax.f32 %v310, 0.0
    %v356 = vmax.f32 %v314, 0.0
    %v357 = vmax.f32 %v316, 0.0
    %v358 = vmax.f32 %v318, 0.0
    %v359 = vmax.f32 %v320, 0.0
    %v360 = vmax.f32 %v324, 0.0
    %v361 = vmax.f32 %v326, 0.0
    %v362 = vmax.f32 %v328, 0.0
    %v363 = vmax.f32 %v330, 0.0
    %v364 = vpack.c.bf16 %v334, %v332
    %v365 = vpack.c.bf16 %v335, %v333
    %v366 = vpack.c.bf16 %v338, %v336
    %v367 = vpack.c.bf16 %v339, %v337
    %v368 = vpack.c.bf16 %v342, %v340
    %v369 = vpack.c.bf16 %v343, %v341
    %v370 = vpack.c.bf16 %v346, %v344
    %v371 = vpack.c.bf16 %v347, %v345
    %v372 = vpack.c.bf16 %v350, %v348
    %v373 = vpack.c.bf16 %v351, %v349
    %v374 = vpack.c.bf16 %v354, %v352
    %v375 = vpack.c.bf16 %v355, %v353
    %v376 = vpack.c.bf16 %v358, %v356
    %v377 = vpack.c.bf16 %v359, %v357
    %v378 = vpack.c.bf16 %v362, %v360
    %v379 = vpack.c.bf16 %v363, %v361
    %v380 = vld [vmem:[%s5] sm:$0xf]
    %v381 = vld [vmem:[%s5 + $0x4] sm:$0xf]
    %v382 = vld [vmem:[%s5 + $0x8] sm:$0xf]
    %v383 = vld [vmem:[%s5 + $0xc] sm:$0xf]
    %v384 = vld [vmem:[%s5 + $0x10] sm:$0xf]
    %v385 = vld [vmem:[%s5 + $0x14] sm:$0xf]
    %v386 = vld [vmem:[%s5 + $0x18] sm:$0xf]
    %v387 = vld [vmem:[%s5 + $0x1c] sm:$0xf]
    %v388 = vld [vmem:[%s5 + $0x20] sm:$0xf]
    %v389 = vld [vmem:[%s5 + $0x24] sm:$0xf]
    %v390 = vld [vmem:[%s5 + $0x28] sm:$0xf]
    %v391 = vld [vmem:[%s5 + $0x2c] sm:$0xf]
    %v392 = vld [vmem:[%s5 + $0x30] sm:$0xf]
    %v393 = vld [vmem:[%s5 + $0x34] sm:$0xf]
    %v394 = vld [vmem:[%s5 + $0x38] sm:$0xf]
    %v395 = vld [vmem:[%s5 + $0x3c] sm:$0xf]
    %v396 = vld [vmem:[%s5 + $0x40] sm:$0xf]
    %v397 = vld [vmem:[%s5 + $0x44] sm:$0xf]
    %v398 = vld [vmem:[%s5 + $0x48] sm:$0xf]
    %v399 = vld [vmem:[%s5 + $0x4c] sm:$0xf]
    %v400 = vld [vmem:[%s5 + $0x50] sm:$0xf]
    %v401 = vld [vmem:[%s5 + $0x54] sm:$0xf]
    %v402 = vld [vmem:[%s5 + $0x58] sm:$0xf]
    %v403 = vld [vmem:[%s5 + $0x5c] sm:$0xf]
    %v404 = vld [vmem:[%s5 + $0x60] sm:$0xf]
    %v405 = vld [vmem:[%s5 + $0x64] sm:$0xf]
    %v406 = vld [vmem:[%s5 + $0x68] sm:$0xf]
    %v407 = vld [vmem:[%s5 + $0x6c] sm:$0xf]
    %v408 = vld [vmem:[%s5 + $0x70] sm:$0xf]
    %v409 = vld [vmem:[%s5 + $0x74] sm:$0xf]
    %v410 = vld [vmem:[%s5 + $0x78] sm:$0xf]
    %v411 = vld [vmem:[%s5 + $0x7c] sm:$0xf]
    %v412 = vld [vmem:[#allocation2 + $0x3] ss:$0 sm:$0xff]
    %v445 = vunpack.c.l.b16 %v380
    %v446 = vunpack.c.l.b16 %v381
    %v447 = vunpack.c.l.b16 %v382
    %v448 = vunpack.c.l.b16 %v383
    %v449 = vunpack.c.l.b16 %v384
    %v450 = vunpack.c.l.b16 %v385
    %v451 = vunpack.c.l.b16 %v386
    %v452 = vunpack.c.l.b16 %v387
    %v453 = vunpack.c.l.b16 %v388
    %v454 = vunpack.c.l.b16 %v389
    %v455 = vunpack.c.l.b16 %v390
    %v456 = vunpack.c.l.b16 %v391
    %v457 = vunpack.c.l.b16 %v392
    %v458 = vunpack.c.l.b16 %v393
    %v459 = vunpack.c.l.b16 %v394
    %v460 = vunpack.c.l.b16 %v395
    %v461 = vunpack.c.l.b16 %v396
    %v462 = vunpack.c.l.b16 %v397
    %v463 = vunpack.c.l.b16 %v398
    %v464 = vunpack.c.l.b16 %v399
    %v465 = vunpack.c.l.b16 %v400
    %v466 = vunpack.c.l.b16 %v401
    %v467 = vunpack.c.l.b16 %v402
    %v468 = vunpack.c.l.b16 %v403
    %v469 = vunpack.c.l.b16 %v404
    %v470 = vunpack.c.l.b16 %v405
    %v471 = vunpack.c.l.b16 %v406
    %v472 = vunpack.c.l.b16 %v407
    %v473 = vunpack.c.l.b16 %v408
    %v474 = vunpack.c.l.b16 %v409
    %v475 = vunpack.c.l.b16 %v410
    %v476 = vunpack.c.l.b16 %v411
    %v477 = vpack.c.b16 %v446, %v445
    %v478 = vpack.c.b16 %v448, %v447
    %v479 = vpack.c.b16 %v450, %v449
    %v480 = vpack.c.b16 %v452, %v451
    %v481 = vpack.c.b16 %v454, %v453
    %v482 = vpack.c.b16 %v456, %v455
    %v483 = vpack.c.b16 %v458, %v457
    %v484 = vpack.c.b16 %v460, %v459
    %v485 = vpack.c.b16 %v462, %v461
    %v486 = vpack.c.b16 %v464, %v463
    %v487 = vpack.c.b16 %v466, %v465
    %v488 = vpack.c.b16 %v468, %v467
    %v489 = vpack.c.b16 %v470, %v469
    %v490 = vpack.c.b16 %v472, %v471
    %v491 = vpack.c.b16 %v474, %v473
    %v492 = vpack.c.b16 %v476, %v475
    %509 = vmatprep.subr.bf16.mxu0 0
    %510 = vmatpush1.bf16.msra.mxu0 %v477
    %511 = vmatprep.subr.bf16.mxu0 0
    %512 = vmatpush1.bf16.msra.mxu0 %v478
    %513 = vmatprep.subr.bf16.mxu0 0
    %514 = vmatpush1.bf16.msra.mxu0 %v479
    %515 = vmatprep.subr.bf16.mxu0 0
    %516 = vmatpush1.bf16.msra.mxu0 %v480
    %517 = vmatprep.subr.bf16.mxu0 0
    %518 = vmatpush1.bf16.msra.mxu0 %v481
    %519 = vmatprep.subr.bf16.mxu0 0
    %520 = vmatpush1.bf16.msra.mxu0 %v482
    %521 = vmatprep.subr.bf16.mxu0 0
    %522 = vmatpush1.bf16.msra.mxu0 %v483
    %523 = vmatprep.subr.bf16.mxu0 0
    %524 = vmatpush1.bf16.msra.mxu0 %v484
    %525 = vmatprep.subr.bf16.mxu0 0
    %526 = vmatpush1.bf16.msra.mxu0 %v485
    %527 = vmatprep.subr.bf16.mxu0 0
    %528 = vmatpush1.bf16.msra.mxu0 %v486
    %529 = vmatprep.subr.bf16.mxu0 0
    %530 = vmatpush1.bf16.msra.mxu0 %v487
    %531 = vmatprep.subr.bf16.mxu0 0
    %532 = vmatpush1.bf16.msra.mxu0 %v488
    %533 = vmatprep.subr.bf16.mxu0 0
    %534 = vmatpush1.bf16.msra.mxu0 %v489
    %535 = vmatprep.subr.bf16.mxu0 0
    %536 = vmatpush1.bf16.msra.mxu0 %v490
    %537 = vmatprep.subr.bf16.mxu0 0
    %538 = vmatpush1.bf16.msra.mxu0 %v491
    %539 = vmatprep.subr.bf16.mxu0 0
    %540 = vmatpush1.bf16.msra.mxu0 %v492
    %541 = vmatprep.mubr.bf16.mxu0 %v365
    %542 = vmatmul.mubr.bf16.gmra.mrb[0].mxu0 %v364
    %v543 = vpop.f32.mrb[0].mxu0
    %v544 = vadd.f32 %v412, %v543
    %v545 = vpop.f32.mrb[0].mxu0
    %v546 = vpop.f32.mrb[0].mxu0
    %v547 = vadd.f32 %v412, %v546
    %v548 = vpop.f32.mrb[0].mxu0
    %549 = vmatprep.mubr.bf16.mxu0 %v367
    %550 = vmatmul.mubr.bf16.gmra.mrb[0].mxu0 %v366
    %v551 = vpop.f32.mrb[0].mxu0
    %v552 = vadd.f32 %v412, %v551
    %v553 = vpop.f32.mrb[0].mxu0
    %v554 = vpop.f32.mrb[0].mxu0
    %v555 = vadd.f32 %v412, %v554
    %v556 = vpop.f32.mrb[0].mxu0
    %557 = vmatprep.mubr.bf16.mxu0 %v369
    %558 = vmatmul.mubr.bf16.gmra.mrb[0].mxu0 %v368
    %v559 = vpop.f32.mrb[0].mxu0
    %v560 = vadd.f32 %v412, %v559
    %v561 = vpop.f32.mrb[0].mxu0
    %v562 = vpop.f32.mrb[0].mxu0
    %v563 = vadd.f32 %v412, %v562
    %v564 = vpop.f32.mrb[0].mxu0
    %565 = vmatprep.mubr.bf16.mxu0 %v371
    %566 = vmatmul.mubr.bf16.gmra.mrb[0].mxu0 %v370
    %v567 = vpop.f32.mrb[0].mxu0
    %v568 = vadd.f32 %v412, %v567
    %v569 = vpop.f32.mrb[0].mxu0
    %v570 = vpop.f32.mrb[0].mxu0
    %v571 = vadd.f32 %v412, %v570
    %v572 = vpop.f32.mrb[0].mxu0
    %573 = vmatprep.mubr.bf16.mxu0 %v373
    %574 = vmatmul.mubr.bf16.gmra.mrb[0].mxu0 %v372
    %v575 = vpop.f32.mrb[0].mxu0
    %v576 = vadd.f32 %v412, %v575
    %v577 = vpop.f32.mrb[0].mxu0
    %v578 = vpop.f32.mrb[0].mxu0
    %v579 = vadd.f32 %v412, %v578
    %v580 = vpop.f32.mrb[0].mxu0
    %581 = vmatprep.mubr.bf16.mxu0 %v375
    %582 = vmatmul.mubr.bf16.gmra.mrb[0].mxu0 %v374
    %v583 = vpop.f32.mrb[0].mxu0
    %v584 = vadd.f32 %v412, %v583
    %v585 = vpop.f32.mrb[0].mxu0
    %v586 = vpop.f32.mrb[0].mxu0
    %v587 = vadd.f32 %v412, %v586
    %v588 = vpop.f32.mrb[0].mxu0
    %589 = vmatprep.mubr.bf16.mxu0 %v377
    %590 = vmatmul.mubr.bf16.gmra.mrb[0].mxu0 %v376
    %v591 = vpop.f32.mrb[0].mxu0
    %v592 = vadd.f32 %v412, %v591
    %v593 = vpop.f32.mrb[0].mxu0
    %v594 = vpop.f32.mrb[0].mxu0
    %v595 = vadd.f32 %v412, %v594
    %v596 = vpop.f32.mrb[0].mxu0
    %597 = vmatprep.mubr.bf16.mxu0 %v379
    %598 = vmatmul.mubr.bf16.gmra.mrb[0].mxu0 %v378
    %v599 = vpop.f32.mrb[0].mxu0
    %v600 = vadd.f32 %v412, %v599
    %v601 = vpop.f32.mrb[0].mxu0
    %v602 = vpop.f32.mrb[0].mxu0
    %v603 = vadd.f32 %v412, %v602
    %v604 = vpop.f32.mrb[0].mxu0
    %605 = vdwg.mxu0
    %v606 = vmax.f32 %v544, 0.0
    %v607 = vmax.f32 %v547, 0.0
    %v608 = vmax.f32 %v552, 0.0
    %v609 = vmax.f32 %v555, 0.0
    %v610 = vmax.f32 %v560, 0.0
    %v611 = vmax.f32 %v563, 0.0
    %v612 = vmax.f32 %v568, 0.0
    %v613 = vmax.f32 %v571, 0.0
    %v614 = vmax.f32 %v576, 0.0
    %v615 = vmax.f32 %v579, 0.0
    %v616 = vmax.f32 %v584, 0.0
    %v617 = vmax.f32 %v587, 0.0
    %v618 = vmax.f32 %v592, 0.0
    %v619 = vmax.f32 %v595, 0.0
    %v620 = vmax.f32 %v600, 0.0
    %v621 = vmax.f32 %v603, 0.0
    %v622 = vld [vmem:[%s6] sm:$0xff]
    %v623 = vld [vmem:[%s6 + $0x8] sm:$0xff]
    %v624 = vld [vmem:[%s6 + $0x10] sm:$0xff]
    %v625 = vld [vmem:[%s6 + $0x18] sm:$0xff]
    %v626 = vld [vmem:[%s6 + $0x20] sm:$0xff]
    %v627 = vld [vmem:[%s6 + $0x28] sm:$0xff]
    %v628 = vld [vmem:[%s6 + $0x30] sm:$0xff]
    %v629 = vld [vmem:[%s6 + $0x38] sm:$0xff]
    %v630 = vld [vmem:[%s6 + $0x40] sm:$0xff]
    %v631 = vld [vmem:[%s6 + $0x48] sm:$0xff]
    %v632 = vld [vmem:[%s6 + $0x50] sm:$0xff]
    %v633 = vld [vmem:[%s6 + $0x58] sm:$0xff]
    %v634 = vld [vmem:[%s6 + $0x60] sm:$0xff]
    %v635 = vld [vmem:[%s6 + $0x68] sm:$0xff]
    %v636 = vld [vmem:[%s6 + $0x70] sm:$0xff]
    %v637 = vld [vmem:[%s6 + $0x78] sm:$0xff]
    %638 = vmatprep.subr.mxu0 0.0
    %639 = vmatpush1.msra.mxu0 %v622
    %640 = vmatprep.subr.mxu0 0.0
    %641 = vmatpush1.msra.mxu0 %v623
    %642 = vmatprep.subr.mxu0 0.0
    %643 = vmatpush1.msra.mxu0 %v624
    %644 = vmatprep.subr.mxu0 0.0
    %645 = vmatpush1.msra.mxu0 %v625
    %646 = vmatprep.subr.mxu0 0.0
    %647 = vmatpush1.msra.mxu0 %v626
    %648 = vmatprep.subr.mxu0 0.0
    %649 = vmatpush1.msra.mxu0 %v627
    %650 = vmatprep.subr.mxu0 0.0
    %651 = vmatpush1.msra.mxu0 %v628
    %652 = vmatprep.subr.mxu0 0.0
    %653 = vmatpush1.msra.mxu0 %v629
    %654 = vmatprep.subr.mxu0 0.0
    %655 = vmatpush1.msra.mxu0 %v630
    %656 = vmatprep.subr.mxu0 0.0
    %657 = vmatpush1.msra.mxu0 %v631
    %658 = vmatprep.subr.mxu0 0.0
    %659 = vmatpush1.msra.mxu0 %v632
    %660 = vmatprep.subr.mxu0 0.0
    %661 = vmatpush1.msra.mxu0 %v633
    %662 = vmatprep.subr.mxu0 0.0
    %663 = vmatpush1.msra.mxu0 %v634
    %664 = vmatprep.subr.mxu0 0.0
    %665 = vmatpush1.msra.mxu0 %v635
    %666 = vmatprep.subr.mxu0 0.0
    %667 = vmatpush1.msra.mxu0 %v636
    %668 = vmatprep.subr.mxu0 0.0
    %669 = vmatpush1.msra.mxu0 %v637
    %670 = vmatprep.subr.mxu0 0.0
    %671 = vmatpush1.msra.mxu0 0.0
    %672 = vmatprep.subr.mxu0 0.0
    %673 = vmatpush1.msra.mxu0 0.0
    %674 = vmatprep.subr.mxu0 0.0
    %675 = vmatpush1.msra.mxu0 0.0
    %676 = vmatprep.subr.mxu0 0.0
    %677 = vmatpush1.msra.mxu0 0.0
    %678 = vmatprep.subr.mxu0 0.0
    %679 = vmatpush1.msra.mxu0 0.0
    %680 = vmatprep.subr.mxu0 0.0
    %681 = vmatpush1.msra.mxu0 0.0
    %682 = vmatprep.subr.mxu0 0.0
    %683 = vmatpush1.msra.mxu0 0.0
    %684 = vmatprep.subr.mxu0 0.0
    %685 = vmatpush1.msra.mxu0 0.0
    %686 = vmatprep.subr.mxu0 0.0
    %687 = vmatpush1.msra.mxu0 0.0
    %688 = vmatprep.subr.mxu0 0.0
    %689 = vmatpush1.msra.mxu0 0.0
    %690 = vmatprep.subr.mxu0 0.0
    %691 = vmatpush1.msra.mxu0 0.0
    %692 = vmatprep.subr.mxu0 0.0
    %693 = vmatpush1.msra.mxu0 0.0
    %694 = vmatprep.subr.mxu0 0.0
    %695 = vmatpush1.msra.mxu0 0.0
    %696 = vmatprep.subr.mxu0 0.0
    %697 = vmatpush1.msra.mxu0 0.0
    %698 = vmatprep.subr.mxu0 0.0
    %699 = vmatpush1.msra.mxu0 0.0
    %700 = vmatprep.subr.mxu0 0.0
    %701 = vmatpush1.msra.mxu0 0.0
    %702 = vmatprep.mubr.f32.mxu0 0.0
    %703 = vmatmul.mubr.f32.gmra.mrb[0].mxu0 %v606
    %v704 = vpop.f32.mrb[0].mxu0
    %v705 = vadd.f32 0.0, %v704
    %v706 = vpop.f32.mrb[0].mxu0
    %707 = vmatprep.mubr.f32.mxu0 0.0
    %708 = vmatmul.mubr.f32.gmra.mrb[0].mxu0 %v607
    %v709 = vpop.f32.mrb[0].mxu0
    %v710 = vadd.f32 0.0, %v709
    %v711 = vpop.f32.mrb[0].mxu0
    %712 = vmatprep.mubr.f32.mxu0 0.0
    %713 = vmatmul.mubr.f32.gmra.mrb[0].mxu0 %v608
    %v714 = vpop.f32.mrb[0].mxu0
    %v715 = vadd.f32 0.0, %v714
    %v716 = vpop.f32.mrb[0].mxu0
    %717 = vmatprep.mubr.f32.mxu0 0.0
    %718 = vmatmul.mubr.f32.gmra.mrb[0].mxu0 %v609
    %v719 = vpop.f32.mrb[0].mxu0
    %v720 = vadd.f32 0.0, %v719
    %v721 = vpop.f32.mrb[0].mxu0
    %722 = vmatprep.mubr.f32.mxu0 0.0
    %723 = vmatmul.mubr.f32.gmra.mrb[0].mxu0 %v610
    %v724 = vpop.f32.mrb[0].mxu0
    %v725 = vadd.f32 0.0, %v724
    %v726 = vpop.f32.mrb[0].mxu0
    %727 = vmatprep.mubr.f32.mxu0 0.0
    %728 = vmatmul.mubr.f32.gmra.mrb[0].mxu0 %v611
    %v729 = vpop.f32.mrb[0].mxu0
    %v730 = vadd.f32 0.0, %v729
    %v731 = vpop.f32.mrb[0].mxu0
    %732 = vmatprep.mubr.f32.mxu0 0.0
    %733 = vmatmul.mubr.f32.gmra.mrb[0].mxu0 %v612
    %v734 = vpop.f32.mrb[0].mxu0
    %v735 = vadd.f32 0.0, %v734
    %v736 = vpop.f32.mrb[0].mxu0
    %737 = vmatprep.mubr.f32.mxu0 0.0
    %738 = vmatmul.mubr.f32.gmra.mrb[0].mxu0 %v613
    %v739 = vpop.f32.mrb[0].mxu0
    %v740 = vadd.f32 0.0, %v739
    %v741 = vpop.f32.mrb[0].mxu0
    %742 = vmatprep.mubr.f32.mxu0 0.0
    %743 = vmatmul.mubr.f32.gmra.mrb[0].mxu0 %v614
    %v744 = vpop.f32.mrb[0].mxu0
    %v745 = vadd.f32 0.0, %v744
    %v746 = vpop.f32.mrb[0].mxu0
    %747 = vmatprep.mubr.f32.mxu0 0.0
    %748 = vmatmul.mubr.f32.gmra.mrb[0].mxu0 %v615
    %v749 = vpop.f32.mrb[0].mxu0
    %v750 = vadd.f32 0.0, %v749
    %v751 = vpop.f32.mrb[0].mxu0
    %752 = vmatprep.mubr.f32.mxu0 0.0
    %753 = vmatmul.mubr.f32.gmra.mrb[0].mxu0 %v616
    %v754 = vpop.f32.mrb[0].mxu0
    %v755 = vadd.f32 0.0, %v754
    %v756 = vpop.f32.mrb[0].mxu0
    %757 = vmatprep.mubr.f32.mxu0 0.0
    %758 = vmatmul.mubr.f32.gmra.mrb[0].mxu0 %v617
    %v759 = vpop.f32.mrb[0].mxu0
    %v760 = vadd.f32 0.0, %v759
    %v761 = vpop.f32.mrb[0].mxu0
    %762 = vmatprep.mubr.f32.mxu0 0.0
    %763 = vmatmul.mubr.f32.gmra.mrb[0].mxu0 %v618
    %v764 = vpop.f32.mrb[0].mxu0
    %v765 = vadd.f32 0.0, %v764
    %v766 = vpop.f32.mrb[0].mxu0
    %767 = vmatprep.mubr.f32.mxu0 0.0
    %768 = vmatmul.mubr.f32.gmra.mrb[0].mxu0 %v619
    %v769 = vpop.f32.mrb[0].mxu0
    %v770 = vadd.f32 0.0, %v769
    %v771 = vpop.f32.mrb[0].mxu0
    %772 = vmatprep.mubr.f32.mxu0 0.0
    %773 = vmatmul.mubr.f32.gmra.mrb[0].mxu0 %v620
    %v774 = vpop.f32.mrb[0].mxu0
    %v775 = vadd.f32 0.0, %v774
    %v776 = vpop.f32.mrb[0].mxu0
    %777 = vmatprep.mubr.f32.mxu0 0.0
    %778 = vmatmul.mubr.f32.gmra.mrb[0].mxu0 %v621
    %v779 = vpop.f32.mrb[0].mxu0
    %v780 = vadd.f32 0.0, %v779
    %v781 = vpop.f32.mrb[0].mxu0
    %782 = vdwg.mxu0
    %799 = vrot.lane.b32.xlu0 %v622, 127
    %v800 = vpop.permute.xlu0 %799
    %801 = vrot.lane.b32.xlu0 %v623, 127
    %v802 = vpop.permute.xlu0 %801
    %803 = vrot.lane.b32.xlu0 %v624, 127
    %v804 = vpop.permute.xlu0 %803
    %805 = vrot.lane.b32.xlu0 %v625, 127
    %v806 = vpop.permute.xlu0 %805
    %807 = vrot.lane.b32.xlu0 %v626, 127
    %v808 = vpop.permute.xlu0 %807
    %809 = vrot.lane.b32.xlu0 %v627, 127
    %v810 = vpop.permute.xlu0 %809
    %811 = vrot.lane.b32.xlu0 %v628, 127
    %v812 = vpop.permute.xlu0 %811
    %813 = vrot.lane.b32.xlu0 %v629, 127
    %v814 = vpop.permute.xlu0 %813
    %815 = vrot.lane.b32.xlu0 %v630, 127
    %v816 = vpop.permute.xlu0 %815
    %817 = vrot.lane.b32.xlu0 %v631, 127
    %v818 = vpop.permute.xlu0 %817
    %819 = vrot.lane.b32.xlu0 %v632, 127
    %v820 = vpop.permute.xlu0 %819
    %821 = vrot.lane.b32.xlu0 %v633, 127
    %v822 = vpop.permute.xlu0 %821
    %823 = vrot.lane.b32.xlu0 %v634, 127
    %v824 = vpop.permute.xlu0 %823
    %825 = vrot.lane.b32.xlu0 %v635, 127
    %v826 = vpop.permute.xlu0 %825
    %827 = vrot.lane.b32.xlu0 %v636, 127
    %v828 = vpop.permute.xlu0 %827
    %829 = vrot.lane.b32.xlu0 %v637, 127
    %v830 = vpop.permute.xlu0 %829
    %v847 = vmul.f32 %v705, %v800
    %v848 = vmul.f32 %v710, %v802
    %v849 = vmul.f32 %v715, %v804
    %v850 = vmul.f32 %v720, %v806
    %v851 = vmul.f32 %v725, %v808
    %v852 = vmul.f32 %v730, %v810
    %v853 = vmul.f32 %v735, %v812
    %v854 = vmul.f32 %v740, %v814
    %v855 = vmul.f32 %v745, %v816
    %v856 = vmul.f32 %v750, %v818
    %v857 = vmul.f32 %v755, %v820
    %v858 = vmul.f32 %v760, %v822
    %v859 = vmul.f32 %v765, %v824
    %v860 = vmul.f32 %v770, %v826
    %v861 = vmul.f32 %v775, %v828
    %v862 = vmul.f32 %v780, %v830
    %863 = vrot.lane.b32.xlu0 %v622, 126
    %v864 = vpop.permute.xlu0 %863
    %865 = vrot.lane.b32.xlu0 %v623, 126
    %v866 = vpop.permute.xlu0 %865
    %867 = vrot.lane.b32.xlu0 %v624, 126
    %v868 = vpop.permute.xlu0 %867
    %869 = vrot.lane.b32.xlu0 %v625, 126
    %v870 = vpop.permute.xlu0 %869
    %871 = vrot.lane.b32.xlu0 %v626, 126
    %v872 = vpop.permute.xlu0 %871
    %873 = vrot.lane.b32.xlu0 %v627, 126
    %v874 = vpop.permute.xlu0 %873
    %875 = vrot.lane.b32.xlu0 %v628, 126
    %v876 = vpop.permute.xlu0 %875
    %877 = vrot.lane.b32.xlu0 %v629, 126
    %v878 = vpop.permute.xlu0 %877
    %879 = vrot.lane.b32.xlu0 %v630, 126
    %v880 = vpop.permute.xlu0 %879
    %881 = vrot.lane.b32.xlu0 %v631, 126
    %v882 = vpop.permute.xlu0 %881
    %883 = vrot.lane.b32.xlu0 %v632, 126
    %v884 = vpop.permute.xlu0 %883
    %885 = vrot.lane.b32.xlu0 %v633, 126
    %v886 = vpop.permute.xlu0 %885
    %887 = vrot.lane.b32.xlu0 %v634, 126
    %v888 = vpop.permute.xlu0 %887
    %889 = vrot.lane.b32.xlu0 %v635, 126
    %v890 = vpop.permute.xlu0 %889
    %891 = vrot.lane.b32.xlu0 %v636, 126
    %v892 = vpop.permute.xlu0 %891
    %893 = vrot.lane.b32.xlu0 %v637, 126
    %v894 = vpop.permute.xlu0 %893
    %v911 = vadd.f32 %v847, %v864
    %v912 = vadd.f32 %v848, %v866
    %v913 = vadd.f32 %v849, %v868
    %v914 = vadd.f32 %v850, %v870
    %v915 = vadd.f32 %v851, %v872
    %v916 = vadd.f32 %v852, %v874
    %v917 = vadd.f32 %v853, %v876
    %v918 = vadd.f32 %v854, %v878
    %v919 = vadd.f32 %v855, %v880
    %v920 = vadd.f32 %v856, %v882
    %v921 = vadd.f32 %v857, %v884
    %v922 = vadd.f32 %v858, %v886
    %v923 = vadd.f32 %v859, %v888
    %v924 = vadd.f32 %v860, %v890
    %v925 = vadd.f32 %v861, %v892
    %v926 = vadd.f32 %v862, %v894
    %v927 = vmax.f32 %v911, 0.0
    %v928 = vmax.f32 %v912, 0.0
    %v929 = vmax.f32 %v913, 0.0
    %v930 = vmax.f32 %v914, 0.0
    %v931 = vmax.f32 %v915, 0.0
    %v932 = vmax.f32 %v916, 0.0
    %v933 = vmax.f32 %v917, 0.0
    %v934 = vmax.f32 %v918, 0.0
    %v935 = vmax.f32 %v919, 0.0
    %v936 = vmax.f32 %v920, 0.0
    %v937 = vmax.f32 %v921, 0.0
    %v938 = vmax.f32 %v922, 0.0
    %v939 = vmax.f32 %v923, 0.0
    %v940 = vmax.f32 %v924, 0.0
    %v941 = vmax.f32 %v925, 0.0
    %v942 = vmax.f32 %v926, 0.0
    %v943 = vld [vmem:[#allocation4] sm:$0xff]
    %v944 = vld [vmem:[#allocation4 + $0x8] sm:$0xff]
    %v945 = vld [vmem:[#allocation4 + $0x10] sm:$0xff]
    %v946 = vld [vmem:[#allocation4 + $0x18] sm:$0xff]
    %947 = vmatprep.subr.mxu0 0.0
    %948 = vmatpush1.msra.mxu0 %v927
    %949 = vmatprep.subr.mxu0 0.0
    %950 = vmatpush1.msra.mxu0 %v928
    %951 = vmatprep.subr.mxu0 0.0
    %952 = vmatpush1.msra.mxu0 %v929
    %953 = vmatprep.subr.mxu0 0.0
    %954 = vmatpush1.msra.mxu0 %v930
    %955 = vmatprep.subr.mxu0 0.0
    %956 = vmatpush1.msra.mxu0 %v931
    %957 = vmatprep.subr.mxu0 0.0
    %958 = vmatpush1.msra.mxu0 %v932
    %959 = vmatprep.subr.mxu0 0.0
    %960 = vmatpush1.msra.mxu0 %v933
    %961 = vmatprep.subr.mxu0 0.0
    %962 = vmatpush1.msra.mxu0 %v934
    %963 = vmatprep.subr.mxu0 0.0
    %964 = vmatpush1.msra.mxu0 %v935
    %965 = vmatprep.subr.mxu0 0.0
    %966 = vmatpush1.msra.mxu0 %v936
    %967 = vmatprep.subr.mxu0 0.0
    %968 = vmatpush1.msra.mxu0 %v937
    %969 = vmatprep.subr.mxu0 0.0
    %970 = vmatpush1.msra.mxu0 %v938
    %971 = vmatprep.subr.mxu0 0.0
    %972 = vmatpush1.msra.mxu0 %v939
    %973 = vmatprep.subr.mxu0 0.0
    %974 = vmatpush1.msra.mxu0 %v940
    %975 = vmatprep.subr.mxu0 0.0
    %976 = vmatpush1.msra.mxu0 %v941
    %977 = vmatprep.subr.mxu0 0.0
    %978 = vmatpush1.msra.mxu0 %v942
    %979 = vmatprep.subr.mxu0 0.0
    %980 = vmatpush1.msra.mxu0 0.0
    %981 = vmatprep.subr.mxu0 0.0
    %982 = vmatpush1.msra.mxu0 0.0
    %983 = vmatprep.subr.mxu0 0.0
    %984 = vmatpush1.msra.mxu0 0.0
    %985 = vmatprep.subr.mxu0 0.0
    %986 = vmatpush1.msra.mxu0 0.0
    %987 = vmatprep.subr.mxu0 0.0
    %988 = vmatpush1.msra.mxu0 0.0
    %989 = vmatprep.subr.mxu0 0.0
    %990 = vmatpush1.msra.mxu0 0.0
    %991 = vmatprep.subr.mxu0 0.0
    %992 = vmatpush1.msra.mxu0 0.0
    %993 = vmatprep.subr.mxu0 0.0
    %994 = vmatpush1.msra.mxu0 0.0
    %995 = vmatprep.subr.mxu0 0.0
    %996 = vmatpush1.msra.mxu0 0.0
    %997 = vmatprep.subr.mxu0 0.0
    %998 = vmatpush1.msra.mxu0 0.0
    %999 = vmatprep.subr.mxu0 0.0
    %1000 = vmatpush1.msra.mxu0 0.0
    %1001 = vmatprep.subr.mxu0 0.0
    %1002 = vmatpush1.msra.mxu0 0.0
    %1003 = vmatprep.subr.mxu0 0.0
    %1004 = vmatpush1.msra.mxu0 0.0
    %1005 = vmatprep.subr.mxu0 0.0
    %1006 = vmatpush1.msra.mxu0 0.0
    %1007 = vmatprep.subr.mxu0 0.0
    %1008 = vmatpush1.msra.mxu0 0.0
    %1009 = vmatprep.subr.mxu0 0.0
    %1010 = vmatpush1.msra.mxu0 0.0
    %1011 = vmatprep.mubr.f32.mxu0 0.0
    %1012 = vmatmul.mubr.f32.gmra.mrb[0].mxu0 %v943
    %v1013 = vpop.f32.mrb[0].mxu0
    %v1014 = vadd.f32 0.0, %v1013
    %v1015 = vpop.f32.mrb[0].mxu0
    %1016 = vmatprep.mubr.f32.mxu0 0.0
    %1017 = vmatmul.mubr.f32.gmra.mrb[0].mxu0 %v944
    %v1018 = vpop.f32.mrb[0].mxu0
    %v1019 = vadd.f32 0.0, %v1018
    %v1020 = vpop.f32.mrb[0].mxu0
    %1021 = vmatprep.mubr.f32.mxu0 0.0
    %1022 = vmatmul.mubr.f32.gmra.mrb[0].mxu0 %v945
    %v1023 = vpop.f32.mrb[0].mxu0
    %v1024 = vadd.f32 0.0, %v1023
    %v1025 = vpop.f32.mrb[0].mxu0
    %1026 = vmatprep.mubr.f32.mxu0 0.0
    %1027 = vmatmul.mubr.f32.gmra.mrb[0].mxu0 %v946
    %v1028 = vpop.f32.mrb[0].mxu0
    %v1029 = vadd.f32 0.0, %v1028
    %v1030 = vpop.f32.mrb[0].mxu0
    %1031 = vdwg.mxu0
    %v1032 = vld [vmem:[%s1] sm:$0xff]
    %v1033 = vld [vmem:[%s1 + $0x8] sm:$0xff]
    %v1034 = vld [vmem:[%s1 + $0x10] sm:$0xff]
    %v1035 = vld [vmem:[%s1 + $0x18] sm:$0xff]
    %v1036 = vld [vmem:[#allocation2 + $0x4] ss:$0 sm:$0xff]
    %v1037 = vmul.f32 %v1032, %v1036
    %v1038 = vmul.f32 %v1033, %v1036
    %v1039 = vmul.f32 %v1034, %v1036
    %v1040 = vmul.f32 %v1035, %v1036
    %v1041 = vld [vmem:[#allocation2 + $0x5] ss:$0 sm:$0xff]
    %v1042 = vadd.f32 %v1037, %v1041
    %v1043 = vadd.f32 %v1038, %v1041
    %v1044 = vadd.f32 %v1039, %v1041
    %v1045 = vadd.f32 %v1040, %v1041
    %v1046 = vmax.f32 %v1042, 0.0
    %v1047 = vmax.f32 %v1043, 0.0
    %v1048 = vmax.f32 %v1044, 0.0
    %v1049 = vmax.f32 %v1045, 0.0
    %v1050 = vld [vmem:[%s8] sm:$0xff]
    %v1051 = vld [vmem:[%s8 + $0x8] sm:$0xff]
    %v1052 = vld [vmem:[#allocation2 + $0x22] ss:$0 sm:$0xff]
    %vm1053 = vcmask 130048
    %v1055 = vsel %vm1053, %v1046, 0
    %v1058 = vsel %vm1053, %v1047, 0
    %v1061 = vsel %vm1053, %v1048, 0
    %v1064 = vsel %vm1053, %v1049, 0
    %1066 = vmatprep.subr.mxu0 0.0
    %1067 = vmatpush1.msra.mxu0 %v1050
    %1068 = vmatprep.subr.mxu0 0.0
    %1069 = vmatpush1.msra.mxu0 %v1051
    %1070 = vmatprep.subr.mxu0 0.0
    %1071 = vmatpush1.msra.mxu0 0.0
    %1072 = vmatprep.subr.mxu0 0.0
    %1073 = vmatpush1.msra.mxu0 0.0
    %1074 = vmatprep.subr.mxu0 0.0
    %1075 = vmatpush1.msra.mxu0 0.0
    %1076 = vmatprep.subr.mxu0 0.0
    %1077 = vmatpush1.msra.mxu0 0.0
    %1078 = vmatprep.subr.mxu0 0.0
    %1079 = vmatpush1.msra.mxu0 0.0
    %1080 = vmatprep.subr.mxu0 0.0
    %1081 = vmatpush1.msra.mxu0 0.0
    %1082 = vmatprep.subr.mxu0 0.0
    %1083 = vmatpush1.msra.mxu0 0.0
    %1084 = vmatprep.subr.mxu0 0.0
    %1085 = vmatpush1.msra.mxu0 0.0
    %1086 = vmatprep.subr.mxu0 0.0
    %1087 = vmatpush1.msra.mxu0 0.0
    %1088 = vmatprep.subr.mxu0 0.0
    %1089 = vmatpush1.msra.mxu0 0.0
    %1090 = vmatprep.subr.mxu0 0.0
    %1091 = vmatpush1.msra.mxu0 0.0
    %1092 = vmatprep.subr.mxu0 0.0
    %1093 = vmatpush1.msra.mxu0 0.0
    %1094 = vmatprep.subr.mxu0 0.0
    %1095 = vmatpush1.msra.mxu0 0.0
    %1096 = vmatprep.subr.mxu0 0.0
    %1097 = vmatpush1.msra.mxu0 0.0
    %1098 = vmatprep.subr.mxu0 0.0
    %1099 = vmatpush1.msra.mxu0 0.0
    %1100 = vmatprep.subr.mxu0 0.0
    %1101 = vmatpush1.msra.mxu0 0.0
    %1102 = vmatprep.subr.mxu0 0.0
    %1103 = vmatpush1.msra.mxu0 0.0
    %1104 = vmatprep.subr.mxu0 0.0
    %1105 = vmatpush1.msra.mxu0 0.0
    %1106 = vmatprep.subr.mxu0 0.0
    %1107 = vmatpush1.msra.mxu0 0.0
    %1108 = vmatprep.subr.mxu0 0.0
    %1109 = vmatpush1.msra.mxu0 0.0
    %1110 = vmatprep.subr.mxu0 0.0
    %1111 = vmatpush1.msra.mxu0 0.0
    %1112 = vmatprep.subr.mxu0 0.0
    %1113 = vmatpush1.msra.mxu0 0.0
    %1114 = vmatprep.subr.mxu0 0.0
    %1115 = vmatpush1.msra.mxu0 0.0
    %1116 = vmatprep.subr.mxu0 0.0
    %1117 = vmatpush1.msra.mxu0 0.0
    %1118 = vmatprep.subr.mxu0 0.0
    %1119 = vmatpush1.msra.mxu0 0.0
    %1120 = vmatprep.subr.mxu0 0.0
    %1121 = vmatpush1.msra.mxu0 0.0
    %1122 = vmatprep.subr.mxu0 0.0
    %1123 = vmatpush1.msra.mxu0 0.0
    %1124 = vmatprep.subr.mxu0 0.0
    %1125 = vmatpush1.msra.mxu0 0.0
    %1126 = vmatprep.subr.mxu0 0.0
    %1127 = vmatpush1.msra.mxu0 0.0
    %1128 = vmatprep.subr.mxu0 0.0
    %1129 = vmatpush1.msra.mxu0 0.0
    %1130 = vmatprep.mubr.f32.mxu0 0.0
    %1131 = vmatmul.mubr.f32.gmra.mrb[0].mxu0 %v1055
    %v1132 = vpop.f32.mrb[0].mxu0
    %v1133 = vadd.f32 %v1052, %v1132
    %v1134 = vpop.f32.mrb[0].mxu0
    %1135 = vmatprep.mubr.f32.mxu0 0.0
    %1136 = vmatmul.mubr.f32.gmra.mrb[0].mxu0 %v1058
    %v1137 = vpop.f32.mrb[0].mxu0
    %v1138 = vadd.f32 %v1052, %v1137
    %v1139 = vpop.f32.mrb[0].mxu0
    %1140 = vmatprep.mubr.f32.mxu0 0.0
    %1141 = vmatmul.mubr.f32.gmra.mrb[0].mxu0 %v1061
    %v1142 = vpop.f32.mrb[0].mxu0
    %v1143 = vadd.f32 %v1052, %v1142
    %v1144 = vpop.f32.mrb[0].mxu0
    %1145 = vmatprep.mubr.f32.mxu0 0.0
    %1146 = vmatmul.mubr.f32.gmra.mrb[0].mxu0 %v1064
    %v1147 = vpop.f32.mrb[0].mxu0
    %v1148 = vadd.f32 %v1052, %v1147
    %v1149 = vpop.f32.mrb[0].mxu0
    %1150 = vdwg.mxu0
    %v1151 = vld [vmem:[%s0] sm:$0xff]
    %v1152 = vld [vmem:[%s0 + $0x8] sm:$0xff]
    %v1153 = vld [vmem:[%s0 + $0x10] sm:$0xff]
    %v1154 = vld [vmem:[%s0 + $0x18] sm:$0xff]
    %v1155 = vld [vmem:[#allocation2 + $0x6] ss:$0 sm:$0xff]
    %v1156 = vmul.f32 %v1151, %v1155
    %v1157 = vmul.f32 %v1152, %v1155
    %v1158 = vmul.f32 %v1153, %v1155
    %v1159 = vmul.f32 %v1154, %v1155
    %v1160 = vld [vmem:[#allocation2 + $0x7] ss:$0 sm:$0xff]
    %v1161 = vadd.f32 %v1156, %v1160
    %v1162 = vadd.f32 %v1157, %v1160
    %v1163 = vadd.f32 %v1158, %v1160
    %v1164 = vadd.f32 %v1159, %v1160
    %v1165 = vmax.f32 %v1161, 0.0
    %v1166 = vmax.f32 %v1162, 0.0
    %v1167 = vmax.f32 %v1163, 0.0
    %v1168 = vmax.f32 %v1164, 0.0
    %v1169 = vpack.c.bf16 %v1166, %v1165
    %v1170 = vpack.c.bf16 %v1168, %v1167
    %v1171 = vld [vmem:[#allocation6] sm:$0xff]
    %v1172 = vld [vmem:[#allocation6 + $0x8] sm:$0xff]
    %v1173 = vld [vmem:[#allocation6 + $0x10] sm:$0xff]
    %v1174 = vld [vmem:[#allocation6 + $0x18] sm:$0xff]
    %v1175 = vld [vmem:[#allocation6 + $0x20] sm:$0xff]
    %v1176 = vld [vmem:[#allocation6 + $0x28] sm:$0xff]
    %v1177 = vld [vmem:[#allocation6 + $0x30] sm:$0xff]
    %v1178 = vld [vmem:[#allocation6 + $0x38] sm:$0xff]
    %s1179 = scalar_lea.vmem [#allocation2], 32
    %v1180 = vld [vmem:[%s1179] ss:$8 sm:$0xf]
    %v1182 = vlaneseq
    %v1183 = vshrl.u32 %v1182, 7
    %v1184 = vsub.s32 0, %v1183
    %v1185 = vrot.slane %v1180, %v1184
    %v1186 = vlaneseq
    %v1187 = vshrl.u32 %v1186, 7
    %v1188 = vsub.s32 1, %v1187
    %v1189 = vrot.slane %v1180, %v1188
    %v1190 = vlaneseq
    %v1191 = vshrl.u32 %v1190, 7
    %v1192 = vsub.s32 2, %v1191
    %v1193 = vrot.slane %v1180, %v1192
    %v1194 = vlaneseq
    %v1195 = vshrl.u32 %v1194, 7
    %v1196 = vsub.s32 3, %v1195
    %v1197 = vrot.slane %v1180, %v1196
    %v1210 = vunpack.c.l.b16 %v1171
    %v1211 = vunpack.c.h.b16 %v1171
    %v1212 = vunpack.c.l.b16 %v1172
    %v1213 = vunpack.c.h.b16 %v1172
    %v1214 = vunpack.c.l.b16 %v1173
    %v1215 = vunpack.c.h.b16 %v1173
    %v1216 = vunpack.c.l.b16 %v1174
    %v1217 = vunpack.c.h.b16 %v1174
    %v1218 = vunpack.c.l.b16 %v1175
    %v1219 = vunpack.c.h.b16 %v1175
    %v1220 = vunpack.c.l.b16 %v1176
    %v1221 = vunpack.c.h.b16 %v1176
    %v1222 = vunpack.c.l.b16 %v1177
    %v1223 = vunpack.c.h.b16 %v1177
    %v1224 = vunpack.c.l.b16 %v1178
    %v1225 = vunpack.c.h.b16 %v1178
    %v1226 = vpack.c.b16 %v1214, %v1210
    %v1227 = vpack.c.b16 %v1215, %v1211
    %v1228 = vpack.c.b16 %v1216, %v1212
    %v1229 = vpack.c.b16 %v1217, %v1213
    %v1230 = vpack.c.b16 %v1222, %v1218
    %v1231 = vpack.c.b16 %v1223, %v1219
    %v1232 = vpack.c.b16 %v1224, %v1220
    %v1233 = vpack.c.b16 %v1225, %v1221
    %v1243 = vsel %vm194, %v1169, 0
    %v1246 = vsel %vm194, %v1170, 0
    %1248 = vmatprep.subr.bf16.mxu0 %v1227
    %1249 = vmatpush1.bf16.msra.mxu0 %v1226
    %1250 = vmatprep.subr.bf16.mxu0 %v1231
    %1251 = vmatpush1.bf16.msra.mxu0 %v1230
    %1252 = vmatprep.subr.bf16.mxu0 0
    %1253 = vmatpush1.bf16.msra.mxu0 0
    %1254 = vmatprep.subr.bf16.mxu0 0
    %1255 = vmatpush1.bf16.msra.mxu0 0
    %1256 = vmatprep.subr.bf16.mxu0 0
    %1257 = vmatpush1.bf16.msra.mxu0 0
    %1258 = vmatprep.subr.bf16.mxu0 0
    %1259 = vmatpush1.bf16.msra.mxu0 0
    %1260 = vmatprep.subr.bf16.mxu0 0
    %1261 = vmatpush1.bf16.msra.mxu0 0
    %1262 = vmatprep.subr.bf16.mxu0 0
    %1263 = vmatpush1.bf16.msra.mxu0 0
    %1264 = vmatprep.subr.bf16.mxu0 0
    %1265 = vmatpush1.bf16.msra.mxu0 0
    %1266 = vmatprep.subr.bf16.mxu0 0
    %1267 = vmatpush1.bf16.msra.mxu0 0
    %1268 = vmatprep.subr.bf16.mxu0 0
    %1269 = vmatpush1.bf16.msra.mxu0 0
    %1270 = vmatprep.subr.bf16.mxu0 0
    %1271 = vmatpush1.bf16.msra.mxu0 0
    %1272 = vmatprep.subr.bf16.mxu0 0
    %1273 = vmatpush1.bf16.msra.mxu0 0
    %1274 = vmatprep.subr.bf16.mxu0 0
    %1275 = vmatpush1.bf16.msra.mxu0 0
    %1276 = vmatprep.subr.bf16.mxu0 0
    %1277 = vmatpush1.bf16.msra.mxu0 0
    %1278 = vmatprep.subr.bf16.mxu0 0
    %1279 = vmatpush1.bf16.msra.mxu0 0
    %1280 = vmatprep.mubr.bf16.mxu0 0
    %1281 = vmatmul.mubr.bf16.gmra.mrb[0].mxu0 %v1243
    %v1282 = vpop.f32.mrb[0].mxu0
    %v1283 = vadd.f32 %v1185, %v1282
    %v1284 = vpop.f32.mrb[0].mxu0
    %v1285 = vadd.f32 %v1189, %v1284
    %v1286 = vpop.f32.mrb[0].mxu0
    %v1287 = vadd.f32 %v1185, %v1286
    %v1288 = vpop.f32.mrb[0].mxu0
    %v1289 = vadd.f32 %v1189, %v1288
    %1290 = vmatprep.mubr.bf16.mxu0 0
    %1291 = vmatmul.mubr.bf16.gmra.mrb[0].mxu0 %v1246
    %v1292 = vpop.f32.mrb[0].mxu0
    %v1293 = vadd.f32 %v1185, %v1292
    %v1294 = vpop.f32.mrb[0].mxu0
    %v1295 = vadd.f32 %v1189, %v1294
    %v1296 = vpop.f32.mrb[0].mxu0
    %v1297 = vadd.f32 %v1185, %v1296
    %v1298 = vpop.f32.mrb[0].mxu0
    %v1299 = vadd.f32 %v1189, %v1298
    %1300 = vdwg.mxu0
    %1301 = vmatprep.subr.bf16.mxu0 %v1229
    %1302 = vmatpush1.bf16.msra.mxu0 %v1228
    %1303 = vmatprep.subr.bf16.mxu0 %v1233
    %1304 = vmatpush1.bf16.msra.mxu0 %v1232
    %1305 = vmatprep.subr.bf16.mxu0 0
    %1306 = vmatpush1.bf16.msra.mxu0 0
    %1307 = vmatprep.subr.bf16.mxu0 0
    %1308 = vmatpush1.bf16.msra.mxu0 0
    %1309 = vmatprep.subr.bf16.mxu0 0
    %1310 = vmatpush1.bf16.msra.mxu0 0
    %1311 = vmatprep.subr.bf16.mxu0 0
    %1312 = vmatpush1.bf16.msra.mxu0 0
    %1313 = vmatprep.subr.bf16.mxu0 0
    %1314 = vmatpush1.bf16.msra.mxu0 0
    %1315 = vmatprep.subr.bf16.mxu0 0
    %1316 = vmatpush1.bf16.msra.mxu0 0
    %1317 = vmatprep.subr.bf16.mxu0 0
    %1318 = vmatpush1.bf16.msra.mxu0 0
    %1319 = vmatprep.subr.bf16.mxu0 0
    %1320 = vmatpush1.bf16.msra.mxu0 0
    %1321 = vmatprep.subr.bf16.mxu0 0
    %1322 = vmatpush1.bf16.msra.mxu0 0
    %1323 = vmatprep.subr.bf16.mxu0 0
    %1324 = vmatpush1.bf16.msra.mxu0 0
    %1325 = vmatprep.subr.bf16.mxu0 0
    %1326 = vmatpush1.bf16.msra.mxu0 0
    %1327 = vmatprep.subr.bf16.mxu0 0
    %1328 = vmatpush1.bf16.msra.mxu0 0
    %1329 = vmatprep.subr.bf16.mxu0 0
    %1330 = vmatpush1.bf16.msra.mxu0 0
    %1331 = vmatprep.subr.bf16.mxu0 0
    %1332 = vmatpush1.bf16.msra.mxu0 0
    %1333 = vmatprep.mubr.bf16.mxu0 0
    %1334 = vmatmul.mubr.bf16.gmra.mrb[0].mxu0 %v1243
    %v1335 = vpop.f32.mrb[0].mxu0
    %v1336 = vadd.f32 %v1193, %v1335
    %v1337 = vpop.f32.mrb[0].mxu0
    %v1338 = vadd.f32 %v1197, %v1337
    %v1339 = vpop.f32.mrb[0].mxu0
    %v1340 = vadd.f32 %v1193, %v1339
    %v1341 = vpop.f32.mrb[0].mxu0
    %v1342 = vadd.f32 %v1197, %v1341
    %1343 = vmatprep.mubr.bf16.mxu0 0
    %1344 = vmatmul.mubr.bf16.gmra.mrb[0].mxu0 %v1246
    %v1345 = vpop.f32.mrb[0].mxu0
    %v1346 = vadd.f32 %v1193, %v1345
    %v1347 = vpop.f32.mrb[0].mxu0
    %v1348 = vadd.f32 %v1197, %v1347
    %v1349 = vpop.f32.mrb[0].mxu0
    %v1350 = vadd.f32 %v1193, %v1349
    %v1351 = vpop.f32.mrb[0].mxu0
    %v1352 = vadd.f32 %v1197, %v1351
    %1353 = vdwg.mxu0
    %v1354 = vmax.f32 %v1283, 0.0
    %v1355 = vmax.f32 %v1285, 0.0
    %v1356 = vmax.f32 %v1336, 0.0
    %v1357 = vmax.f32 %v1338, 0.0
    %v1358 = vmax.f32 %v1287, 0.0
    %v1359 = vmax.f32 %v1289, 0.0
    %v1360 = vmax.f32 %v1340, 0.0
    %v1361 = vmax.f32 %v1342, 0.0
    %v1362 = vmax.f32 %v1293, 0.0
    %v1363 = vmax.f32 %v1295, 0.0
    %v1364 = vmax.f32 %v1346, 0.0
    %v1365 = vmax.f32 %v1348, 0.0
    %v1366 = vmax.f32 %v1297, 0.0
    %v1367 = vmax.f32 %v1299, 0.0
    %v1368 = vmax.f32 %v1350, 0.0
    %v1369 = vmax.f32 %v1352, 0.0
    %v1370 = vpack.c.bf16 %v1358, %v1354
    %v1371 = vpack.c.bf16 %v1359, %v1355
    %v1372 = vpack.c.bf16 %v1360, %v1356
    %v1373 = vpack.c.bf16 %v1361, %v1357
    %v1374 = vpack.c.bf16 %v1366, %v1362
    %v1375 = vpack.c.bf16 %v1367, %v1363
    %v1376 = vpack.c.bf16 %v1368, %v1364
    %v1377 = vpack.c.bf16 %v1369, %v1365
    %v1378 = vld [vmem:[%s10] sm:$0xff]
    %v1379 = vld [vmem:[%s10 + $0x8] sm:$0xff]
    %v1380 = vld [vmem:[%s10 + $0x10] sm:$0xff]
    %v1381 = vld [vmem:[%s10 + $0x18] sm:$0xff]
    %v1382 = vld [vmem:[%s10 + $0x20] sm:$0xff]
    %v1383 = vld [vmem:[%s10 + $0x28] sm:$0xff]
    %v1384 = vld [vmem:[%s10 + $0x30] sm:$0xff]
    %v1385 = vld [vmem:[%s10 + $0x38] sm:$0xff]
    %v1386 = vld [vmem:[%s10 + $0x40] sm:$0xff]
    %v1387 = vld [vmem:[%s10 + $0x48] sm:$0xff]
    %v1388 = vld [vmem:[%s10 + $0x50] sm:$0xff]
    %v1389 = vld [vmem:[%s10 + $0x58] sm:$0xff]
    %v1390 = vld [vmem:[%s10 + $0x60] sm:$0xff]
    %v1391 = vld [vmem:[%s10 + $0x68] sm:$0xff]
    %v1392 = vld [vmem:[%s10 + $0x70] sm:$0xff]
    %v1393 = vld [vmem:[%s10 + $0x78] sm:$0xff]
    %v1394 = vld [vmem:[%s10 + $0x80] sm:$0xff]
    %v1395 = vld [vmem:[%s10 + $0x88] sm:$0xff]
    %v1396 = vld [vmem:[%s10 + $0x90] sm:$0xff]
    %v1397 = vld [vmem:[%s10 + $0x98] sm:$0xff]
    %v1398 = vld [vmem:[%s10 + $0xa0] sm:$0xff]
    %v1399 = vld [vmem:[%s10 + $0xa8] sm:$0xff]
    %v1400 = vld [vmem:[%s10 + $0xb0] sm:$0xff]
    %v1401 = vld [vmem:[%s10 + $0xb8] sm:$0xff]
    %v1402 = vld [vmem:[%s10 + $0xc0] sm:$0xff]
    %v1403 = vld [vmem:[%s10 + $0xc8] sm:$0xff]
    %v1404 = vld [vmem:[%s10 + $0xd0] sm:$0xff]
    %v1405 = vld [vmem:[%s10 + $0xd8] sm:$0xff]
    %v1406 = vld [vmem:[%s10 + $0xe0] sm:$0xff]
    %v1407 = vld [vmem:[%s10 + $0xe8] sm:$0xff]
    %v1408 = vld [vmem:[%s10 + $0xf0] sm:$0xff]
    %v1409 = vld [vmem:[%s10 + $0xf8] sm:$0xff]
    %v1410 = vld [vmem:[%s10 + $0x100] sm:$0xff]
    %v1411 = vld [vmem:[%s10 + $0x108] sm:$0xff]
    %v1412 = vld [vmem:[%s10 + $0x110] sm:$0xff]
    %v1413 = vld [vmem:[%s10 + $0x118] sm:$0xff]
    %v1414 = vld [vmem:[%s10 + $0x120] sm:$0xff]
    %v1415 = vld [vmem:[%s10 + $0x128] sm:$0xff]
    %v1416 = vld [vmem:[%s10 + $0x130] sm:$0xff]
    %v1417 = vld [vmem:[%s10 + $0x138] sm:$0xff]
    %v1418 = vld [vmem:[%s10 + $0x140] sm:$0xff]
    %v1419 = vld [vmem:[%s10 + $0x148] sm:$0xff]
    %v1420 = vld [vmem:[%s10 + $0x150] sm:$0xff]
    %v1421 = vld [vmem:[%s10 + $0x158] sm:$0xff]
    %v1422 = vld [vmem:[%s10 + $0x160] sm:$0xff]
    %v1423 = vld [vmem:[%s10 + $0x168] sm:$0xff]
    %v1424 = vld [vmem:[%s10 + $0x170] sm:$0xff]
    %v1425 = vld [vmem:[%s10 + $0x178] sm:$0xff]
    %v1426 = vld [vmem:[%s10 + $0x180] sm:$0xff]
    %v1427 = vld [vmem:[%s10 + $0x188] sm:$0xff]
    %v1428 = vld [vmem:[%s10 + $0x190] sm:$0xff]
    %v1429 = vld [vmem:[%s10 + $0x198] sm:$0xff]
    %v1430 = vld [vmem:[%s10 + $0x1a0] sm:$0xff]
    %v1431 = vld [vmem:[%s10 + $0x1a8] sm:$0xff]
    %v1432 = vld [vmem:[%s10 + $0x1b0] sm:$0xff]
    %v1433 = vld [vmem:[%s10 + $0x1b8] sm:$0xff]
    %v1434 = vld [vmem:[%s10 + $0x1c0] sm:$0xff]
    %v1435 = vld [vmem:[%s10 + $0x1c8] sm:$0xff]
    %v1436 = vld [vmem:[%s10 + $0x1d0] sm:$0xff]
    %v1437 = vld [vmem:[%s10 + $0x1d8] sm:$0xff]
    %v1438 = vld [vmem:[%s10 + $0x1e0] sm:$0xff]
    %v1439 = vld [vmem:[%s10 + $0x1e8] sm:$0xff]
    %v1440 = vld [vmem:[%s10 + $0x1f0] sm:$0xff]
    %v1441 = vld [vmem:[%s10 + $0x1f8] sm:$0xff]
    %s1442 = scalar_lea.vmem [#allocation2], 33
    %v1443 = vld [vmem:[%s1442] ss:$8 sm:$0x3]
    %v1445 = vlaneseq
    %v1446 = vshrl.u32 %v1445, 7
    %v1447 = vsub.s32 0, %v1446
    %v1448 = vrot.slane %v1443, %v1447
    %v1449 = vlaneseq
    %v1450 = vshrl.u32 %v1449, 7
    %v1451 = vsub.s32 1, %v1450
    %v1452 = vrot.slane %v1443, %v1451
    %v1519 = vunpack.c.l.b16 %v1378
    %v1520 = vunpack.c.h.b16 %v1378
    %v1521 = vunpack.c.l.b16 %v1379
    %v1522 = vunpack.c.h.b16 %v1379
    %v1523 = vunpack.c.l.b16 %v1380
    %v1524 = vunpack.c.h.b16 %v1380
    %v1525 = vunpack.c.l.b16 %v1381
    %v1526 = vunpack.c.h.b16 %v1381
    %v1527 = vunpack.c.l.b16 %v1382
    %v1528 = vunpack.c.h.b16 %v1382
    %v1529 = vunpack.c.l.b16 %v1383
    %v1530 = vunpack.c.h.b16 %v1383
    %v1531 = vunpack.c.l.b16 %v1384
    %v1532 = vunpack.c.h.b16 %v1384
    %v1533 = vunpack.c.l.b16 %v1385
    %v1534 = vunpack.c.h.b16 %v1385
    %v1535 = vunpack.c.l.b16 %v1386
    %v1536 = vunpack.c.h.b16 %v1386
    %v1537 = vunpack.c.l.b16 %v1387
    %v1538 = vunpack.c.h.b16 %v1387
    %v1539 = vunpack.c.l.b16 %v1388
    %v1540 = vunpack.c.h.b16 %v1388
    %v1541 = vunpack.c.l.b16 %v1389
    %v1542 = vunpack.c.h.b16 %v1389
    %v1543 = vunpack.c.l.b16 %v1390
    %v1544 = vunpack.c.h.b16 %v1390
    %v1545 = vunpack.c.l.b16 %v1391
    %v1546 = vunpack.c.h.b16 %v1391
    %v1547 = vunpack.c.l.b16 %v1392
    %v1548 = vunpack.c.h.b16 %v1392
    %v1549 = vunpack.c.l.b16 %v1393
    %v1550 = vunpack.c.h.b16 %v1393
    %v1551 = vunpack.c.l.b16 %v1394
    %v1552 = vunpack.c.h.b16 %v1394
    %v1553 = vunpack.c.l.b16 %v1395
    %v1554 = vunpack.c.h.b16 %v1395
    %v1555 = vunpack.c.l.b16 %v1396
    %v1556 = vunpack.c.h.b16 %v1396
    %v1557 = vunpack.c.l.b16 %v1397
    %v1558 = vunpack.c.h.b16 %v1397
    %v1559 = vunpack.c.l.b16 %v1398
    %v1560 = vunpack.c.h.b16 %v1398
    %v1561 = vunpack.c.l.b16 %v1399
    %v1562 = vunpack.c.h.b16 %v1399
    %v1563 = vunpack.c.l.b16 %v1400
    %v1564 = vunpack.c.h.b16 %v1400
    %v1565 = vunpack.c.l.b16 %v1401
    %v1566 = vunpack.c.h.b16 %v1401
    %v1567 = vunpack.c.l.b16 %v1402
    %v1568 = vunpack.c.h.b16 %v1402
    %v1569 = vunpack.c.l.b16 %v1403
    %v1570 = vunpack.c.h.b16 %v1403
    %v1571 = vunpack.c.l.b16 %v1404
    %v1572 = vunpack.c.h.b16 %v1404
    %v1573 = vunpack.c.l.b16 %v1405
    %v1574 = vunpack.c.h.b16 %v1405
    %v1575 = vunpack.c.l.b16 %v1406
    %v1576 = vunpack.c.h.b16 %v1406
    %v1577 = vunpack.c.l.b16 %v1407
    %v1578 = vunpack.c.h.b16 %v1407
    %v1579 = vunpack.c.l.b16 %v1408
    %v1580 = vunpack.c.h.b16 %v1408
    %v1581 = vunpack.c.l.b16 %v1409
    %v1582 = vunpack.c.h.b16 %v1409
    %v1583 = vunpack.c.l.b16 %v1410
    %v1584 = vunpack.c.h.b16 %v1410
    %v1585 = vunpack.c.l.b16 %v1411
    %v1586 = vunpack.c.h.b16 %v1411
    %v1587 = vunpack.c.l.b16 %v1412
    %v1588 = vunpack.c.h.b16 %v1412
    %v1589 = vunpack.c.l.b16 %v1413
    %v1590 = vunpack.c.h.b16 %v1413
    %v1591 = vunpack.c.l.b16 %v1414
    %v1592 = vunpack.c.h.b16 %v1414
    %v1593 = vunpack.c.l.b16 %v1415
    %v1594 = vunpack.c.h.b16 %v1415
    %v1595 = vunpack.c.l.b16 %v1416
    %v1596 = vunpack.c.h.b16 %v1416
    %v1597 = vunpack.c.l.b16 %v1417
    %v1598 = vunpack.c.h.b16 %v1417
    %v1599 = vunpack.c.l.b16 %v1418
    %v1600 = vunpack.c.h.b16 %v1418
    %v1601 = vunpack.c.l.b16 %v1419
    %v1602 = vunpack.c.h.b16 %v1419
    %v1603 = vunpack.c.l.b16 %v1420
    %v1604 = vunpack.c.h.b16 %v1420
    %v1605 = vunpack.c.l.b16 %v1421
    %v1606 = vunpack.c.h.b16 %v1421
    %v1607 = vunpack.c.l.b16 %v1422
    %v1608 = vunpack.c.h.b16 %v1422
    %v1609 = vunpack.c.l.b16 %v1423
    %v1610 = vunpack.c.h.b16 %v1423
    %v1611 = vunpack.c.l.b16 %v1424
    %v1612 = vunpack.c.h.b16 %v1424
    %v1613 = vunpack.c.l.b16 %v1425
    %v1614 = vunpack.c.h.b16 %v1425
    %v1615 = vunpack.c.l.b16 %v1426
    %v1616 = vunpack.c.h.b16 %v1426
    %v1617 = vunpack.c.l.b16 %v1427
    %v1618 = vunpack.c.h.b16 %v1427
    %v1619 = vunpack.c.l.b16 %v1428
    %v1620 = vunpack.c.h.b16 %v1428
    %v1621 = vunpack.c.l.b16 %v1429
    %v1622 = vunpack.c.h.b16 %v1429
    %v1623 = vunpack.c.l.b16 %v1430
    %v1624 = vunpack.c.h.b16 %v1430
    %v1625 = vunpack.c.l.b16 %v1431
    %v1626 = vunpack.c.h.b16 %v1431
    %v1627 = vunpack.c.l.b16 %v1432
    %v1628 = vunpack.c.h.b16 %v1432
    %v1629 = vunpack.c.l.b16 %v1433
    %v1630 = vunpack.c.h.b16 %v1433
    %v1631 = vunpack.c.l.b16 %v1434
    %v1632 = vunpack.c.h.b16 %v1434
    %v1633 = vunpack.c.l.b16 %v1435
    %v1634 = vunpack.c.h.b16 %v1435
    %v1635 = vunpack.c.l.b16 %v1436
    %v1636 = vunpack.c.h.b16 %v1436
    %v1637 = vunpack.c.l.b16 %v1437
    %v1638 = vunpack.c.h.b16 %v1437
    %v1639 = vunpack.c.l.b16 %v1438
    %v1640 = vunpack.c.h.b16 %v1438
    %v1641 = vunpack.c.l.b16 %v1439
    %v1642 = vunpack.c.h.b16 %v1439
    %v1643 = vunpack.c.l.b16 %v1440
    %v1644 = vunpack.c.h.b16 %v1440
    %v1645 = vunpack.c.l.b16 %v1441
    %v1646 = vunpack.c.h.b16 %v1441
    %v1647 = vpack.c.b16 %v1521, %v1519
    %v1648 = vpack.c.b16 %v1522, %v1520
    %v1649 = vpack.c.b16 %v1525, %v1523
    %v1650 = vpack.c.b16 %v1526, %v1524
    %v1651 = vpack.c.b16 %v1529, %v1527
    %v1652 = vpack.c.b16 %v1530, %v1528
    %v1653 = vpack.c.b16 %v1533, %v1531
    %v1654 = vpack.c.b16 %v1534, %v1532
    %v1655 = vpack.c.b16 %v1537, %v1535
    %v1656 = vpack.c.b16 %v1538, %v1536
    %v1657 = vpack.c.b16 %v1541, %v1539
    %v1658 = vpack.c.b16 %v1542, %v1540
    %v1659 = vpack.c.b16 %v1545, %v1543
    %v1660 = vpack.c.b16 %v1546, %v1544
    %v1661 = vpack.c.b16 %v1549, %v1547
    %v1662 = vpack.c.b16 %v1550, %v1548
    %v1663 = vpack.c.b16 %v1553, %v1551
    %v1664 = vpack.c.b16 %v1554, %v1552
    %v1665 = vpack.c.b16 %v1557, %v1555
    %v1666 = vpack.c.b16 %v1558, %v1556
    %v1667 = vpack.c.b16 %v1561, %v1559
    %v1668 = vpack.c.b16 %v1562, %v1560
    %v1669 = vpack.c.b16 %v1565, %v1563
    %v1670 = vpack.c.b16 %v1566, %v1564
    %v1671 = vpack.c.b16 %v1569, %v1567
    %v1672 = vpack.c.b16 %v1570, %v1568
    %v1673 = vpack.c.b16 %v1573, %v1571
    %v1674 = vpack.c.b16 %v1574, %v1572
    %v1675 = vpack.c.b16 %v1577, %v1575
    %v1676 = vpack.c.b16 %v1578, %v1576
    %v1677 = vpack.c.b16 %v1581, %v1579
    %v1678 = vpack.c.b16 %v1582, %v1580
    %v1679 = vpack.c.b16 %v1585, %v1583
    %v1680 = vpack.c.b16 %v1586, %v1584
    %v1681 = vpack.c.b16 %v1589, %v1587
    %v1682 = vpack.c.b16 %v1590, %v1588
    %v1683 = vpack.c.b16 %v1593, %v1591
    %v1684 = vpack.c.b16 %v1594, %v1592
    %v1685 = vpack.c.b16 %v1597, %v1595
    %v1686 = vpack.c.b16 %v1598, %v1596
    %v1687 = vpack.c.b16 %v1601, %v1599
    %v1688 = vpack.c.b16 %v1602, %v1600
    %v1689 = vpack.c.b16 %v1605, %v1603
    %v1690 = vpack.c.b16 %v1606, %v1604
    %v1691 = vpack.c.b16 %v1609, %v1607
    %v1692 = vpack.c.b16 %v1610, %v1608
    %v1693 = vpack.c.b16 %v1613, %v1611
    %v1694 = vpack.c.b16 %v1614, %v1612
    %v1695 = vpack.c.b16 %v1617, %v1615
    %v1696 = vpack.c.b16 %v1618, %v1616
    %v1697 = vpack.c.b16 %v1621, %v1619
    %v1698 = vpack.c.b16 %v1622, %v1620
    %v1699 = vpack.c.b16 %v1625, %v1623
    %v1700 = vpack.c.b16 %v1626, %v1624
    %v1701 = vpack.c.b16 %v1629, %v1627
    %v1702 = vpack.c.b16 %v1630, %v1628
    %v1703 = vpack.c.b16 %v1633, %v1631
    %v1704 = vpack.c.b16 %v1634, %v1632
    %v1705 = vpack.c.b16 %v1637, %v1635
    %v1706 = vpack.c.b16 %v1638, %v1636
    %v1707 = vpack.c.b16 %v1641, %v1639
    %v1708 = vpack.c.b16 %v1642, %v1640
    %v1709 = vpack.c.b16 %v1645, %v1643
    %v1710 = vpack.c.b16 %v1646, %v1644
    %1775 = vmatprep.subr.bf16.mxu0 %v1648
    %1776 = vmatpush1.bf16.msra.mxu0 %v1647
    %1777 = vmatprep.subr.bf16.mxu0 %v1650
    %1778 = vmatpush1.bf16.msra.mxu0 %v1649
    %1779 = vmatprep.subr.bf16.mxu0 %v1652
    %1780 = vmatpush1.bf16.msra.mxu0 %v1651
    %1781 = vmatprep.subr.bf16.mxu0 %v1654
    %1782 = vmatpush1.bf16.msra.mxu0 %v1653
    %1783 = vmatprep.subr.bf16.mxu0 %v1656
    %1784 = vmatpush1.bf16.msra.mxu0 %v1655
    %1785 = vmatprep.subr.bf16.mxu0 %v1658
    %1786 = vmatpush1.bf16.msra.mxu0 %v1657
    %1787 = vmatprep.subr.bf16.mxu0 %v1660
    %1788 = vmatpush1.bf16.msra.mxu0 %v1659
    %1789 = vmatprep.subr.bf16.mxu0 %v1662
    %1790 = vmatpush1.bf16.msra.mxu0 %v1661
    %1791 = vmatprep.subr.bf16.mxu0 %v1664
    %1792 = vmatpush1.bf16.msra.mxu0 %v1663
    %1793 = vmatprep.subr.bf16.mxu0 %v1666
    %1794 = vmatpush1.bf16.msra.mxu0 %v1665
    %1795 = vmatprep.subr.bf16.mxu0 %v1668
    %1796 = vmatpush1.bf16.msra.mxu0 %v1667
    %1797 = vmatprep.subr.bf16.mxu0 %v1670
    %1798 = vmatpush1.bf16.msra.mxu0 %v1669
    %1799 = vmatprep.subr.bf16.mxu0 %v1672
    %1800 = vmatpush1.bf16.msra.mxu0 %v1671
    %1801 = vmatprep.subr.bf16.mxu0 %v1674
    %1802 = vmatpush1.bf16.msra.mxu0 %v1673
    %1803 = vmatprep.subr.bf16.mxu0 %v1676
    %1804 = vmatpush1.bf16.msra.mxu0 %v1675
    %1805 = vmatprep.subr.bf16.mxu0 %v1678
    %1806 = vmatpush1.bf16.msra.mxu0 %v1677
    %1807 = vmatprep.mubr.bf16.mxu0 %v1371
    %1808 = vmatmul.mubr.bf16.gmra.mrb[0].mxu0 %v1370
    %v1809 = vpop.f32.mrb[0].mxu0
    %v1810 = vadd.f32 %v1448, %v1809
    %v1811 = vpop.f32.mrb[0].mxu0
    %v1812 = vadd.f32 %v1452, %v1811
    %v1813 = vpop.f32.mrb[0].mxu0
    %v1814 = vadd.f32 %v1448, %v1813
    %v1815 = vpop.f32.mrb[0].mxu0
    %v1816 = vadd.f32 %v1452, %v1815
    %1817 = vmatprep.mubr.bf16.mxu0 %v1375
    %1818 = vmatmul.mubr.bf16.gmra.mrb[0].mxu0 %v1374
    %v1819 = vpop.f32.mrb[0].mxu0
    %v1820 = vadd.f32 %v1448, %v1819
    %v1821 = vpop.f32.mrb[0].mxu0
    %v1822 = vadd.f32 %v1452, %v1821
    %v1823 = vpop.f32.mrb[0].mxu0
    %v1824 = vadd.f32 %v1448, %v1823
    %v1825 = vpop.f32.mrb[0].mxu0
    %v1826 = vadd.f32 %v1452, %v1825
    %1827 = vdwg.mxu0
    %1828 = vmatprep.subr.bf16.mxu0 %v1680
    %1829 = vmatpush1.bf16.msra.mxu0 %v1679
    %1830 = vmatprep.subr.bf16.mxu0 %v1682
    %1831 = vmatpush1.bf16.msra.mxu0 %v1681
    %1832 = vmatprep.subr.bf16.mxu0 %v1684
    %1833 = vmatpush1.bf16.msra.mxu0 %v1683
    %1834 = vmatprep.subr.bf16.mxu0 %v1686
    %1835 = vmatpush1.bf16.msra.mxu0 %v1685
    %1836 = vmatprep.subr.bf16.mxu0 %v1688
    %1837 = vmatpush1.bf16.msra.mxu0 %v1687
    %1838 = vmatprep.subr.bf16.mxu0 %v1690
    %1839 = vmatpush1.bf16.msra.mxu0 %v1689
    %1840 = vmatprep.subr.bf16.mxu0 %v1692
    %1841 = vmatpush1.bf16.msra.mxu0 %v1691
    %1842 = vmatprep.subr.bf16.mxu0 %v1694
    %1843 = vmatpush1.bf16.msra.mxu0 %v1693
    %1844 = vmatprep.subr.bf16.mxu0 %v1696
    %1845 = vmatpush1.bf16.msra.mxu0 %v1695
    %1846 = vmatprep.subr.bf16.mxu0 %v1698
    %1847 = vmatpush1.bf16.msra.mxu0 %v1697
    %1848 = vmatprep.subr.bf16.mxu0 %v1700
    %1849 = vmatpush1.bf16.msra.mxu0 %v1699
    %1850 = vmatprep.subr.bf16.mxu0 %v1702
    %1851 = vmatpush1.bf16.msra.mxu0 %v1701
    %1852 = vmatprep.subr.bf16.mxu0 %v1704
    %1853 = vmatpush1.bf16.msra.mxu0 %v1703
    %1854 = vmatprep.subr.bf16.mxu0 %v1706
    %1855 = vmatpush1.bf16.msra.mxu0 %v1705
    %1856 = vmatprep.subr.bf16.mxu0 %v1708
    %1857 = vmatpush1.bf16.msra.mxu0 %v1707
    %1858 = vmatprep.subr.bf16.mxu0 %v1710
    %1859 = vmatpush1.bf16.msra.mxu0 %v1709
    %1860 = vmatprep.mubr.bf16.mxu0 %v1373
    %1861 = vmatmul.mubr.bf16.gmra.mrb[0].mxu0 %v1372
    %v1862 = vpop.f32.mrb[0].mxu0
    %v1863 = vadd.f32 %v1810, %v1862
    %v1864 = vpop.f32.mrb[0].mxu0
    %v1865 = vadd.f32 %v1812, %v1864
    %v1866 = vpop.f32.mrb[0].mxu0
    %v1867 = vadd.f32 %v1814, %v1866
    %v1868 = vpop.f32.mrb[0].mxu0
    %v1869 = vadd.f32 %v1816, %v1868
    %1870 = vmatprep.mubr.bf16.mxu0 %v1377
    %1871 = vmatmul.mubr.bf16.gmra.mrb[0].mxu0 %v1376
    %v1872 = vpop.f32.mrb[0].mxu0
    %v1873 = vadd.f32 %v1820, %v1872
    %v1874 = vpop.f32.mrb[0].mxu0
    %v1875 = vadd.f32 %v1822, %v1874
    %v1876 = vpop.f32.mrb[0].mxu0
    %v1877 = vadd.f32 %v1824, %v1876
    %v1878 = vpop.f32.mrb[0].mxu0
    %v1879 = vadd.f32 %v1826, %v1878
    %1880 = vdwg.mxu0
    %v1881 = vmax.f32 %v1863, 0.0
    %v1882 = vmax.f32 %v1865, 0.0
    %v1883 = vmax.f32 %v1867, 0.0
    %v1884 = vmax.f32 %v1869, 0.0
    %v1885 = vmax.f32 %v1873, 0.0
    %v1886 = vmax.f32 %v1875, 0.0
    %v1887 = vmax.f32 %v1877, 0.0
    %v1888 = vmax.f32 %v1879, 0.0
    %v1889 = vld [vmem:[%s11] sm:$0xff]
    %v1890 = vld [vmem:[%s11 + $0x8] sm:$0xff]
    %v1891 = vld [vmem:[%s11 + $0x10] sm:$0xff]
    %v1892 = vld [vmem:[%s11 + $0x18] sm:$0xff]
    %v1893 = vld [vmem:[%s11 + $0x20] sm:$0xff]
    %v1894 = vld [vmem:[%s11 + $0x28] sm:$0xff]
    %v1895 = vld [vmem:[%s11 + $0x30] sm:$0xff]
    %v1896 = vld [vmem:[%s11 + $0x38] sm:$0xff]
    %v1897 = vld [vmem:[%s11 + $0x40] sm:$0xff]
    %v1898 = vld [vmem:[%s11 + $0x48] sm:$0xff]
    %v1899 = vld [vmem:[%s11 + $0x50] sm:$0xff]
    %v1900 = vld [vmem:[%s11 + $0x58] sm:$0xff]
    %v1901 = vld [vmem:[%s11 + $0x60] sm:$0xff]
    %v1902 = vld [vmem:[%s11 + $0x68] sm:$0xff]
    %v1903 = vld [vmem:[%s11 + $0x70] sm:$0xff]
    %v1904 = vld [vmem:[%s11 + $0x78] sm:$0xff]
    %v1905 = vld [vmem:[%s11 + $0x80] sm:$0xff]
    %v1906 = vld [vmem:[%s11 + $0x88] sm:$0xff]
    %v1907 = vld [vmem:[%s11 + $0x90] sm:$0xff]
    %v1908 = vld [vmem:[%s11 + $0x98] sm:$0xff]
    %v1909 = vld [vmem:[%s11 + $0xa0] sm:$0xff]
    %v1910 = vld [vmem:[%s11 + $0xa8] sm:$0xff]
    %v1911 = vld [vmem:[%s11 + $0xb0] sm:$0xff]
    %v1912 = vld [vmem:[%s11 + $0xb8] sm:$0xff]
    %v1913 = vld [vmem:[%s11 + $0xc0] sm:$0xff]
    %v1914 = vld [vmem:[%s11 + $0xc8] sm:$0xff]
    %v1915 = vld [vmem:[%s11 + $0xd0] sm:$0xff]
    %v1916 = vld [vmem:[%s11 + $0xd8] sm:$0xff]
    %v1917 = vld [vmem:[%s11 + $0xe0] sm:$0xff]
    %v1918 = vld [vmem:[%s11 + $0xe8] sm:$0xff]
    %v1919 = vld [vmem:[%s11 + $0xf0] sm:$0xff]
    %v1920 = vld [vmem:[%s11 + $0xf8] sm:$0xff]
    %1921 = vmatprep.subr.mxu0 0.0
    %1922 = vmatpush1.msra.mxu0 %v1889
    %1923 = vmatprep.subr.mxu0 0.0
    %1924 = vmatpush1.msra.mxu0 %v1890
    %1925 = vmatprep.subr.mxu0 0.0
    %1926 = vmatpush1.msra.mxu0 %v1891
    %1927 = vmatprep.subr.mxu0 0.0
    %1928 = vmatpush1.msra.mxu0 %v1892
    %1929 = vmatprep.subr.mxu0 0.0
    %1930 = vmatpush1.msra.mxu0 %v1893
    %1931 = vmatprep.subr.mxu0 0.0
    %1932 = vmatpush1.msra.mxu0 %v1894
    %1933 = vmatprep.subr.mxu0 0.0
    %1934 = vmatpush1.msra.mxu0 %v1895
    %1935 = vmatprep.subr.mxu0 0.0
    %1936 = vmatpush1.msra.mxu0 %v1896
    %1937 = vmatprep.subr.mxu0 0.0
    %1938 = vmatpush1.msra.mxu0 %v1897
    %1939 = vmatprep.subr.mxu0 0.0
    %1940 = vmatpush1.msra.mxu0 %v1898
    %1941 = vmatprep.subr.mxu0 0.0
    %1942 = vmatpush1.msra.mxu0 %v1899
    %1943 = vmatprep.subr.mxu0 0.0
    %1944 = vmatpush1.msra.mxu0 %v1900
    %1945 = vmatprep.subr.mxu0 0.0
    %1946 = vmatpush1.msra.mxu0 %v1901
    %1947 = vmatprep.subr.mxu0 0.0
    %1948 = vmatpush1.msra.mxu0 %v1902
    %1949 = vmatprep.subr.mxu0 0.0
    %1950 = vmatpush1.msra.mxu0 %v1903
    %1951 = vmatprep.subr.mxu0 0.0
    %1952 = vmatpush1.msra.mxu0 %v1904
    %1953 = vmatprep.subr.mxu0 0.0
    %1954 = vmatpush1.msra.mxu0 %v1905
    %1955 = vmatprep.subr.mxu0 0.0
    %1956 = vmatpush1.msra.mxu0 %v1906
    %1957 = vmatprep.subr.mxu0 0.0
    %1958 = vmatpush1.msra.mxu0 %v1907
    %1959 = vmatprep.subr.mxu0 0.0
    %1960 = vmatpush1.msra.mxu0 %v1908
    %1961 = vmatprep.subr.mxu0 0.0
    %1962 = vmatpush1.msra.mxu0 %v1909
    %1963 = vmatprep.subr.mxu0 0.0
    %1964 = vmatpush1.msra.mxu0 %v1910
    %1965 = vmatprep.subr.mxu0 0.0
    %1966 = vmatpush1.msra.mxu0 %v1911
    %1967 = vmatprep.subr.mxu0 0.0
    %1968 = vmatpush1.msra.mxu0 %v1912
    %1969 = vmatprep.subr.mxu0 0.0
    %1970 = vmatpush1.msra.mxu0 %v1913
    %1971 = vmatprep.subr.mxu0 0.0
    %1972 = vmatpush1.msra.mxu0 %v1914
    %1973 = vmatprep.subr.mxu0 0.0
    %1974 = vmatpush1.msra.mxu0 %v1915
    %1975 = vmatprep.subr.mxu0 0.0
    %1976 = vmatpush1.msra.mxu0 %v1916
    %1977 = vmatprep.subr.mxu0 0.0
    %1978 = vmatpush1.msra.mxu0 %v1917
    %1979 = vmatprep.subr.mxu0 0.0
    %1980 = vmatpush1.msra.mxu0 %v1918
    %1981 = vmatprep.subr.mxu0 0.0
    %1982 = vmatpush1.msra.mxu0 %v1919
    %1983 = vmatprep.subr.mxu0 0.0
    %1984 = vmatpush1.msra.mxu0 %v1920
    %1985 = vmatprep.mubr.f32.mxu0 %v1882
    %1986 = vmatmul.mubr.f32.gmra.mrb[0].mxu0 %v1881
    %v1987 = vpop.f32.mrb[0].mxu0
    %v1988 = vadd.f32 %v1014, %v1987
    %v1989 = vpop.f32.mrb[0].mxu0
    %1990 = vmatprep.mubr.f32.mxu0 %v1884
    %1991 = vmatmul.mubr.f32.gmra.mrb[0].mxu0 %v1883
    %v1992 = vpop.f32.mrb[0].mxu0
    %v1993 = vadd.f32 %v1019, %v1992
    %v1994 = vpop.f32.mrb[0].mxu0
    %1995 = vmatprep.mubr.f32.mxu0 %v1886
    %1996 = vmatmul.mubr.f32.gmra.mrb[0].mxu0 %v1885
    %v1997 = vpop.f32.mrb[0].mxu0
    %v1998 = vadd.f32 %v1024, %v1997
    %v1999 = vpop.f32.mrb[0].mxu0
    %2000 = vmatprep.mubr.f32.mxu0 %v1888
    %2001 = vmatmul.mubr.f32.gmra.mrb[0].mxu0 %v1887
    %v2002 = vpop.f32.mrb[0].mxu0
    %v2003 = vadd.f32 %v1029, %v2002
    %v2004 = vpop.f32.mrb[0].mxu0
    %2005 = vdwg.mxu0
    %v2006 = vld [vmem:[#allocation2 + $0x23] ss:$0 sm:$0xff]
    %v2007 = vadd.f32 %v1988, %v2006
    %v2008 = vadd.f32 %v1993, %v2006
    %v2009 = vadd.f32 %v1998, %v2006
    %v2010 = vadd.f32 %v2003, %v2006
    %v2011 = vxor.u32 %v1133, 2147483648
    %v2012 = vxor.u32 %v1138, 2147483648
    %v2013 = vxor.u32 %v1143, 2147483648
    %v2014 = vxor.u32 %v1148, 2147483648
    %v2015 = vmul.f32 %v2011, 1.442695
    %v2016 = vpow.pop %v2015
    %v2017 = vmul.f32 %v2012, 1.442695
    %v2018 = vpow.pop %v2017
    %v2019 = vmul.f32 %v2013, 1.442695
    %v2020 = vpow.pop %v2019
    %v2021 = vmul.f32 %v2014, 1.442695
    %v2022 = vpow.pop %v2021
    %v2023 = vadd.f32 %v2016, 1.0
    %v2024 = vadd.f32 %v2018, 1.0
    %v2025 = vadd.f32 %v2020, 1.0
    %v2026 = vadd.f32 %v2022, 1.0
    %v2027 = vrcp.pop %v2023
    %v2028 = vmul.f32 1.0, %v2027
    %v2029 = vrcp.pop %v2024
    %v2030 = vmul.f32 1.0, %v2029
    %v2031 = vrcp.pop %v2025
    %v2032 = vmul.f32 1.0, %v2031
    %v2033 = vrcp.pop %v2026
    %v2034 = vmul.f32 1.0, %v2033
    %v2035 = vmul.f32 %v2028, %v2007
    %v2036 = vmul.f32 %v2030, %v2008
    %v2037 = vmul.f32 %v2032, %v2009
    %v2038 = vmul.f32 %v2034, %v2010
    %vm2039 = vcmask 7168
    %2040 = vst.msk [vmem:[%s12] sm:$0xff] %vm2039, %v2035
    %2041 = vst.msk [vmem:[%s12 + $0x8] sm:$0xff] %vm2039, %v2036
    %2042 = vst.msk [vmem:[%s12 + $0x10] sm:$0xff] %vm2039, %v2037
    %2043 = vst.msk [vmem:[%s12 + $0x18] sm:$0xff] %vm2039, %v2038
    // Predicated region
    $region62: #{qnet_forward.1} parent=1 // pred_check
      _
    $region63: #{qnet_forward.1} parent=1 // pred_check_branch
      %2045 = sbr.rel (0) target = $region65
    $region64: #{qnet_forward.1} parent=1 // pred_region
      _
    $region65: #{qnet_forward.1} parent=1 // pred_fallthru
      _
    // Predicated region
    $region66: #{qnet_forward.1} parent=1 // pred_check
      _
    $region67: #{qnet_forward.1} parent=1 // pred_check_branch
      %2047 = sbr.rel (0) target = $region69
    $region68: #{qnet_forward.1} parent=1 // pred_region
      _
    $region69: #{qnet_forward.1} parent=1 // pred_fallthru
      _
    %2048 = vsyncpa [#allocation3], 1
    %2049 = vsyncpa [#allocation5], 1

</llo_original>
